<compile_context>
chip_gen: v7x
topology: tpu7x:2x2x1
jax: 0.10.0
libtpu: 0.0.40
codegen_flags: <defaults>
</compile_context>

<pallas_src>
import functools
import math

import jax
import jax.numpy as jnp
from jax.experimental import pallas as pl
from jax.experimental.pallas import tpu as pltpu


def _round_up(x, m):
    return (x + m - 1) // m * m


def _lstm_kernel(zx_ref, wh_hbm, h0_hbm, c0_hbm,
                 out_ref, h_out_ref, c_out_ref,
                 wh_vmem, h_scr, c_scr,
                 *, hidden_pad, time_chunk, seq_len, batch_tile, unroll):
    H = hidden_pad                  # padded hidden size (multiple of 128)
    T = time_chunk                  # timesteps per grid step
    bi = pl.program_id(0)           # batch shard (parallel axis)
    ci = pl.program_id(1)           # time chunk (sequential axis)

    # First chunk of each batch shard: bring Wh into VMEM (single-buffered,
    # resident for all chunks) and initialize the recurrent state from the
    # per-shard slice of (h0, c0).  h0/c0 arrive as raw HBM refs (pl.ANY), so
    # they cost no double-buffered VMEM blocks.
    @pl.when(ci == 0)
    def _():
        pltpu.sync_copy(wh_hbm, wh_vmem)
        row0 = bi * batch_tile
        pltpu.sync_copy(h0_hbm.at[pl.ds(row0, batch_tile), :], h_scr)
        pltpu.sync_copy(c0_hbm.at[pl.ds(row0, batch_tile), :], c_scr)

    wh = wh_vmem[...]               # (H_pad, 4*H_pad), compute dtype
    base_t = ci * T                 # first global timestep of this chunk

    def step(t, carry):
        h, c = carry                                   # (TB, H) float32 each
        # Only the recurrent matmul lives in the serial loop; the input
        # projection (x @ Wx + b) was hoisted out of the kernel entirely and
        # arrives precomputed in f32 via zx_ref.
        z = zx_ref[t] + jnp.dot(h.astype(wh.dtype), wh,
                                preferred_element_type=jnp.float32)

        # Two wide EUP ops instead of four small ones.
        gates = jax.nn.sigmoid(z[:, :3 * H])           # [f | i | o]
        f_t = gates[:, :H]
        i_t = gates[:, H:2 * H]
        o_t = gates[:, 2 * H:]
        c_tilde = jnp.tanh(z[:, 3 * H:])

        c_new = f_t * c + i_t * c_tilde
        h_new = o_t * jnp.tanh(c_new)

        out_ref[t] = h_new.astype(out_ref.dtype)

        # Snapshot the state at the last *valid* timestep.  This handles
        # S % T != 0 without per-step vector selects in the steady state and
        # lets the kernel emit h_final directly (no post-kernel gather).
        @pl.when(base_t + t == seq_len - 1)
        def _():
            h_out_ref[...] = h_new.astype(h_out_ref.dtype)
            c_out_ref[...] = c_new.astype(c_out_ref.dtype)

        return h_new, c_new

    h_fin, c_fin = jax.lax.fori_loop(0, T, step,
                                     (h_scr[...], c_scr[...]),
                                     unroll=unroll)
    h_scr[...] = h_fin
    c_scr[...] = c_fin


def lstm_layer(x, wx, wh, b, hidden=None, *,
               compute_dtype=jnp.bfloat16, time_chunk=32, batch_tile=None):
    """x: (S, B, I); wx: (I, 4H); wh: (H, 4H); b: (4H,) or (1, 4H).

    Gate order along the 4H axis: forget, input, output, candidate.
    Returns (outputs (S,B,H), (h_final (B,H), c_final (B,H))).
    """
    S, B, I = x.shape
    H = wh.shape[0]
    assert wx.shape == (I, 4 * H) and wh.shape == (H, 4 * H)
    b = jnp.reshape(b, (1, 4 * H)).astype(jnp.float32)

    # --- pad to hardware tiles ------------------------------------------------
    sub = 16 if jnp.dtype(compute_dtype).itemsize == 2 else 8   # sublane pack
    B_pad = _round_up(B, sub)
    I_pad = _round_up(I, 128)
    H_pad = _round_up(H, 128)
    GH = 4 * H_pad

    T = max(1, min(int(time_chunk), S))
    S_pad = _round_up(S, T)
    n_chunks = S_pad // T
    unroll = math.gcd(T, 8)          # partial unroll, always divides T

    if batch_tile is None:
        TB = B_pad                   # single shard (safe default everywhere)
    else:
        TB = _round_up(min(int(batch_tile), B_pad), sub)
        B_pad = _round_up(B_pad, TB)
    n_bshards = B_pad // TB

    def _pad_gate_cols(w, H_in, H_out):
        # (K, 4*H_in) -> (K, 4*H_out), zero-padding each gate's column block.
        K = w.shape[0]
        w4 = jnp.pad(w.reshape(K, 4, H_in), ((0, 0), (0, 0), (0, H_out - H_in)))
        return w4.reshape(K, 4 * H_out)

    wx_p = jnp.pad(_pad_gate_cols(wx.astype(jnp.float32), H, H_pad),
                   ((0, I_pad - I), (0, 0))).astype(compute_dtype)
    wh_p = jnp.pad(_pad_gate_cols(wh.astype(jnp.float32), H, H_pad),
                   ((0, H_pad - H), (0, 0))).astype(compute_dtype)
    b_p = _pad_gate_cols(b, H, H_pad)                       # (1, GH) f32

    x_p = jnp.pad(x, ((0, S_pad - S), (0, B_pad - B), (0, I_pad - I)))

    # --- hoisted input projection (non-recurrent, full-MXU-row matmul) --------
    # zx = x @ Wx + b over the whole padded sequence, f32 accumulation.
    zx = jnp.dot(x_p.reshape(S_pad * B_pad, I_pad).astype(compute_dtype), wx_p,
                 preferred_element_type=jnp.float32) + b_p
    zx = zx.reshape(S_pad, B_pad, GH)

    if hidden is None:
        h0 = jnp.zeros((B_pad, H_pad), jnp.float32)
        c0 = jnp.zeros((B_pad, H_pad), jnp.float32)
    else:
        h0_in, c0_in = hidden
        h0 = jnp.pad(h0_in.astype(jnp.float32),
                     ((0, B_pad - B), (0, H_pad - H)))
        c0 = jnp.pad(c0_in.astype(jnp.float32),
                     ((0, B_pad - B), (0, H_pad - H)))

    out_dtype = x.dtype

    # --- generation-aware VMEM budget ------------------------------------------
    w_item = jnp.dtype(compute_dtype).itemsize
    o_item = jnp.dtype(out_dtype).itemsize
    est = H_pad * GH * w_item                       # Wh resident (single buf)
    est += 2 * T * TB * GH * 4                      # zx blocks (f32, 2x buf)
    est += 2 * T * TB * H_pad * o_item              # out blocks (2x buf)
    est += 4 * TB * H_pad * o_item                  # h_out / c_out blocks
    est += 2 * TB * H_pad * 4                       # h/c scratch (f32 carry)
    try:
        vmem_cap = int(pltpu.get_tpu_info().vmem_capacity_bytes)
    except Exception:
        vmem_cap = 64 << 20                         # conservative (v7x per-TC)
    vmem_limit = min(max(int(1.5 * est) + (8 << 20), 32 << 20),
                     vmem_cap - (8 << 20))
    vmem_limit = int(max(vmem_limit, 16 << 20))

    kernel = functools.partial(_lstm_kernel, hidden_pad=H_pad, time_chunk=T,
                               seq_len=S, batch_tile=TB, unroll=unroll)

    grid_spec = pltpu.PrefetchScalarGridSpec(
        num_scalar_prefetch=0,
        grid=(n_bshards, n_chunks),
        in_specs=[
            pl.BlockSpec((T, TB, GH), lambda bi, ci: (ci, bi, 0)),   # zx chunk
            pl.BlockSpec(memory_space=pl.ANY),                       # Wh (HBM)
            pl.BlockSpec(memory_space=pl.ANY),                       # h0 (HBM)
            pl.BlockSpec(memory_space=pl.ANY),                       # c0 (HBM)
        ],
        out_specs=[
            pl.BlockSpec((T, TB, H_pad), lambda bi, ci: (ci, bi, 0)),  # outputs
            pl.BlockSpec((TB, H_pad), lambda bi, ci: (bi, 0)),         # final h
            pl.BlockSpec((TB, H_pad), lambda bi, ci: (bi, 0)),         # final c
        ],
        scratch_shapes=[
            pltpu.VMEM((H_pad, GH), compute_dtype),   # Wh resident in VMEM
            pltpu.VMEM((TB, H_pad), jnp.float32),     # h state (f32 carry)
            pltpu.VMEM((TB, H_pad), jnp.float32),     # c state (f32 carry)
        ],
    )

    out_shapes = (
        jax.ShapeDtypeStruct((S_pad, B_pad, H_pad), out_dtype),   # hidden seq
        jax.ShapeDtypeStruct((B_pad, H_pad), out_dtype),          # final h
        jax.ShapeDtypeStruct((B_pad, H_pad), out_dtype),          # final c
    )

    out_p, h_p, c_p = pl.pallas_call(
        kernel,
        out_shape=out_shapes,
        grid_spec=grid_spec,
        compiler_params=pltpu.CompilerParams(
            dimension_semantics=("parallel", "arbitrary"),  # time sequential
            vmem_limit_bytes=vmem_limit),
    )(zx, wh_p, h0, c0)

    outputs = out_p[:S, :B, :H]
    return outputs, (h_p[:B, :H], c_p[:B, :H])


def lstm_reference(x, wx, wh, b):
    """Pure-JAX reference mirroring the PyTorch forward loop (fused weights)."""
    S, B, I = x.shape
    H = wh.shape[0]
    b = jnp.reshape(b, (1, 4 * H))
    h = jnp.zeros((B, H), jnp.float32)
    c = jnp.zeros((B, H), jnp.float32)

    def step(carry, x_t):
        h, c = carry
        z = x_t @ wx + h @ wh + b
        f = jax.nn.sigmoid(z[:, 0 * H:1 * H])
        i = jax.nn.sigmoid(z[:, 1 * H:2 * H])
        o = jax.nn.sigmoid(z[:, 2 * H:3 * H])
        ct = jnp.tanh(z[:, 3 * H:4 * H])
        c = f * c + i * ct
        h = o * jnp.tanh(c)
        return (h, c), h

    (h, c), outs = jax.lax.scan(step, (h, c), x)
    return outs, (h, c)


def init_params(key, input_size, hidden_size):
    """Init mimicking nn.Linear's uniform(-1/sqrt(fan_in), +1/sqrt(fan_in)).

    Produces fused weights Wx:(I,4H), Wh:(H,4H), b:(4H,) with gate column
    order [f, i, o, c]; the x-linear and h-linear biases are summed
    (mathematically identical to the PyTorch module)."""
    keys = jax.random.split(key, 16)
    kx = 1.0 / math.sqrt(input_size)
    kh = 1.0 / math.sqrt(hidden_size)
    wx_cols, wh_cols, b_cols = [], [], []
    for g in range(4):
        w_in = jax.random.uniform(keys[4 * g + 0], (input_size, hidden_size),
                                  jnp.float32, -kx, kx)
        b_in = jax.random.uniform(keys[4 * g + 1], (hidden_size,),
                                  jnp.float32, -kx, kx)
        w_h = jax.random.uniform(keys[4 * g + 2], (hidden_size, hidden_size),
                                 jnp.float32, -kh, kh)
        b_h = jax.random.uniform(keys[4 * g + 3], (hidden_size,),
                                 jnp.float32, -kh, kh)
        wx_cols.append(w_in)
        wh_cols.append(w_h)
        b_cols.append(b_in + b_h)
    wx = jnp.concatenate(wx_cols, axis=1)
    wh = jnp.concatenate(wh_cols, axis=1)
    b = jnp.concatenate(b_cols)
    return wx, wh, b


if __name__ == "__main__":
    seq_len, batch, input_size, hidden_size = 8, 4, 16, 32

    key = jax.random.PRNGKey(0)
    k_x, k_p = jax.random.split(key)
    x = jax.random.normal(k_x, (seq_len, batch, input_size), jnp.float32)
    wx, wh, b = init_params(k_p, input_size, hidden_size)

    ref_out, (ref_h, ref_c) = lstm_reference(x, wx, wh, b)

    # f32 compute path: tight correctness check against the reference.
    out32, (h32, c32) = lstm_layer(x, wx, wh, b, compute_dtype=jnp.float32)
    jax.block_until_ready((out32, h32, c32))
    assert jnp.allclose(out32, ref_out, atol=1e-4, rtol=1e-4)
    assert jnp.allclose(h32, ref_h, atol=1e-4, rtol=1e-4)
    assert jnp.allclose(c32, ref_c, atol=1e-4, rtol=1e-4)

    # bf16 matmul path (production default): loose sanity check.
    out16, (h16, c16) = lstm_layer(x, wx, wh, b, compute_dtype=jnp.bfloat16)
    jax.block_until_ready((out16, h16, c16))
    assert jnp.allclose(out16, ref_out, atol=5e-2, rtol=5e-2)
    assert jnp.allclose(h16, ref_h, atol=5e-2, rtol=5e-2)
    assert jnp.allclose(c16, ref_c, atol=5e-2, rtol=5e-2)

    print("KERNEL_OK")
</pallas_src>

<mosaic_0001>
module attributes {stable_mosaic.version = 11 : i64} {
  func.func @_lstm_kernel(%arg0: i32, %arg1: i32, %arg2: memref<8x8x512xf32, #tpu.memory_space<vmem>>, %arg3: memref<128x512xf32, #tpu.memory_space<any>>, %arg4: memref<8x128xf32, #tpu.memory_space<any>>, %arg5: memref<8x128xf32, #tpu.memory_space<any>>, %arg6: memref<8x8x128xf32, #tpu.memory_space<vmem>>, %arg7: memref<8x128xf32, #tpu.memory_space<vmem>>, %arg8: memref<8x128xf32, #tpu.memory_space<vmem>>, %arg9: memref<128x512xf32, #tpu.memory_space<vmem>>, %arg10: memref<8x128xf32, #tpu.memory_space<vmem>>, %arg11: memref<8x128xf32, #tpu.memory_space<vmem>>) attributes {dimension_semantics = [#tpu.dimension_semantics<parallel>, #tpu.dimension_semantics<arbitrary>], iteration_bounds = array<i64: 1, 1>, scalar_prefetch = 0 : i64, scratch_operands = 3 : i64, tpu.core_type = #tpu.core_type<tc>, window_params = [{transform_indices = @transform_0, window_bounds = array<i64: 8, 8, 512>}, {}, {}, {}, {transform_indices = @transform_4, window_bounds = array<i64: 8, 8, 128>}, {transform_indices = @transform_5, window_bounds = array<i64: 8, 128>}, {transform_indices = @transform_6, window_bounds = array<i64: 8, 128>}]} {
    %c0_i32 = arith.constant 0 : i32
    %0 = arith.cmpi eq, %arg1, %c0_i32 : i32
    %1 = arith.extui %0 : i1 to i32
    %c0_i32_0 = arith.constant 0 : i32
    %2 = arith.cmpi ne, %1, %c0_i32_0 : i32
    scf.if %2 {
      "tpu.region"() ({
        %242 = tpu.sem_alloc : memref<!tpu.dma_semaphore, #tpu.memory_space<semaphore_mem>>
        tpu.enqueue_dma source(%arg3 : memref<128x512xf32, #tpu.memory_space<any>>) target(%arg9 : memref<128x512xf32, #tpu.memory_space<vmem>>) target_semaphore(%242 : memref<!tpu.dma_semaphore, #tpu.memory_space<semaphore_mem>>)
        tpu.wait_dma2 semaphore(%242 : memref<!tpu.dma_semaphore, #tpu.memory_space<semaphore_mem>>) src(%arg3 : memref<128x512xf32, #tpu.memory_space<any>>) dst(%arg9 : memref<128x512xf32, #tpu.memory_space<vmem>>)
        tpu.yield
      }) : () -> ()
      %c8_i32_75 = arith.constant 8 : i32
      %241 = arith.muli %arg0, %c8_i32_75 : i32
      "tpu.region"() ({
        %242 = tpu.sem_alloc : memref<!tpu.dma_semaphore, #tpu.memory_space<semaphore_mem>>
        %c0_i32_76 = arith.constant 0 : i32
        %243 = tpu.memref_slice %arg4[%241, %c0_i32_76] : memref<8x128xf32, #tpu.memory_space<any>> -> memref<8x128xf32, #tpu.memory_space<any>>
        tpu.enqueue_dma source(%243 : memref<8x128xf32, #tpu.memory_space<any>>) target(%arg10 : memref<8x128xf32, #tpu.memory_space<vmem>>) target_semaphore(%242 : memref<!tpu.dma_semaphore, #tpu.memory_space<semaphore_mem>>)
        %c0_i32_77 = arith.constant 0 : i32
        %244 = tpu.memref_slice %arg4[%241, %c0_i32_77] : memref<8x128xf32, #tpu.memory_space<any>> -> memref<8x128xf32, #tpu.memory_space<any>>
        tpu.wait_dma2 semaphore(%242 : memref<!tpu.dma_semaphore, #tpu.memory_space<semaphore_mem>>) src(%244 : memref<8x128xf32, #tpu.memory_space<any>>) dst(%arg10 : memref<8x128xf32, #tpu.memory_space<vmem>>)
        tpu.yield
      }) : () -> ()
      "tpu.region"() ({
        %242 = tpu.sem_alloc : memref<!tpu.dma_semaphore, #tpu.memory_space<semaphore_mem>>
        %c0_i32_76 = arith.constant 0 : i32
        %243 = tpu.memref_slice %arg5[%241, %c0_i32_76] : memref<8x128xf32, #tpu.memory_space<any>> -> memref<8x128xf32, #tpu.memory_space<any>>
        tpu.enqueue_dma source(%243 : memref<8x128xf32, #tpu.memory_space<any>>) target(%arg11 : memref<8x128xf32, #tpu.memory_space<vmem>>) target_semaphore(%242 : memref<!tpu.dma_semaphore, #tpu.memory_space<semaphore_mem>>)
        %c0_i32_77 = arith.constant 0 : i32
        %244 = tpu.memref_slice %arg5[%241, %c0_i32_77] : memref<8x128xf32, #tpu.memory_space<any>> -> memref<8x128xf32, #tpu.memory_space<any>>
        tpu.wait_dma2 semaphore(%242 : memref<!tpu.dma_semaphore, #tpu.memory_space<semaphore_mem>>) src(%244 : memref<8x128xf32, #tpu.memory_space<any>>) dst(%arg11 : memref<8x128xf32, #tpu.memory_space<vmem>>)
        tpu.yield
      }) : () -> ()
    } else {
    }
    %c0 = arith.constant 0 : index
    %c0_1 = arith.constant 0 : index
    %3 = vector.load %arg9[%c0, %c0_1] : memref<128x512xf32, #tpu.memory_space<vmem>>, vector<128x512xf32>
    %c8_i32 = arith.constant 8 : i32
    %4 = arith.muli %arg1, %c8_i32 : i32
    %c0_2 = arith.constant 0 : index
    %c0_3 = arith.constant 0 : index
    %5 = vector.load %arg10[%c0_2, %c0_3] : memref<8x128xf32, #tpu.memory_space<vmem>>, vector<8x128xf32>
    %c0_4 = arith.constant 0 : index
    %c0_5 = arith.constant 0 : index
    %6 = vector.load %arg11[%c0_4, %c0_5] : memref<8x128xf32, #tpu.memory_space<vmem>>, vector<8x128xf32>
    %c0_i32_6 = arith.constant 0 : i32
    %7 = arith.index_cast %c0_i32_6 : i32 to index
    %c0_7 = arith.constant 0 : index
    %c0_8 = arith.constant 0 : index
    %8 = vector.load %arg2[%7, %c0_7, %c0_8] : memref<8x8x512xf32, #tpu.memory_space<vmem>>, vector<1x8x512xf32>
    %9 = vector.shape_cast %8 : vector<1x8x512xf32> to vector<8x512xf32>
    %cst = arith.constant dense<0.000000e+00> : vector<8x512xf32>
    %10 = tpu.matmul %5, %3, %cst {dimension_numbers = #tpu.dot_dimension_numbers<[1], [0], [0], [1], [0, 0, 1, 1], [], []>} : vector<8x128xf32>, vector<128x512xf32>, vector<8x512xf32> -> vector<8x512xf32>
    %11 = arith.addf %9, %10 : vector<8x512xf32>
    %12 = vector.extract_strided_slice %11 {offsets = [0, 0], sizes = [8, 384], strides = [1, 1]} : vector<8x512xf32> to vector<8x384xf32>
    %13 = arith.negf %12 : vector<8x384xf32>
    %14 = math.exp %13 : vector<8x384xf32>
    %cst_9 = arith.constant 1.000000e+00 : f32
    %15 = vector.broadcast %cst_9 : f32 to vector<8x384xf32>
    %16 = arith.addf %15, %14 : vector<8x384xf32>
    %17 = arith.divf %15, %16 : vector<8x384xf32>
    %18 = vector.extract_strided_slice %17 {offsets = [0, 0], sizes = [8, 128], strides = [1, 1]} : vector<8x384xf32> to vector<8x128xf32>
    %19 = vector.extract_strided_slice %17 {offsets = [0, 128], sizes = [8, 128], strides = [1, 1]} : vector<8x384xf32> to vector<8x128xf32>
    %20 = vector.extract_strided_slice %17 {offsets = [0, 256], sizes = [8, 128], strides = [1, 1]} : vector<8x384xf32> to vector<8x128xf32>
    %21 = vector.extract_strided_slice %11 {offsets = [0, 384], sizes = [8, 128], strides = [1, 1]} : vector<8x512xf32> to vector<8x128xf32>
    %22 = math.tanh %21 : vector<8x128xf32>
    %23 = arith.mulf %18, %6 : vector<8x128xf32>
    %24 = arith.mulf %19, %22 : vector<8x128xf32>
    %25 = arith.addf %23, %24 : vector<8x128xf32>
    %26 = math.tanh %25 : vector<8x128xf32>
    %27 = arith.mulf %20, %26 : vector<8x128xf32>
    %28 = arith.index_cast %c0_i32_6 : i32 to index
    %c0_10 = arith.constant 0 : index
    %c0_11 = arith.constant 0 : index
    %29 = vector.load %arg6[%28, %c0_10, %c0_11] : memref<8x8x128xf32, #tpu.memory_space<vmem>>, vector<1x8x128xf32>
    %30 = vector.shape_cast %29 : vector<1x8x128xf32> to vector<8x128xf32>
    %31 = vector.shape_cast %27 : vector<8x128xf32> to vector<1x8x128xf32>
    tpu.vector_store %arg6[%28, %c0_10, %c0_11], %31 {strides = array<i32>} : memref<8x8x128xf32, #tpu.memory_space<vmem>>, vector<1x8x128xf32>,
    %32 = arith.addi %4, %c0_i32_6 : i32
    %c7_i32 = arith.constant 7 : i32
    %33 = arith.cmpi eq, %32, %c7_i32 : i32
    %34 = arith.extui %33 : i1 to i32
    %c0_i32_12 = arith.constant 0 : i32
    %35 = arith.cmpi ne, %34, %c0_i32_12 : i32
    scf.if %35 {
      %c0_75 = arith.constant 0 : index
      %c0_76 = arith.constant 0 : index
      %241 = vector.load %arg7[%c0_75, %c0_76] : memref<8x128xf32, #tpu.memory_space<vmem>>, vector<8x128xf32>
      tpu.vector_store %arg7[%c0_75, %c0_76], %27 {strides = array<i32>} : memref<8x128xf32, #tpu.memory_space<vmem>>, vector<8x128xf32>,
      %c0_77 = arith.constant 0 : index
      %c0_78 = arith.constant 0 : index
      %242 = vector.load %arg8[%c0_77, %c0_78] : memref<8x128xf32, #tpu.memory_space<vmem>>, vector<8x128xf32>
      tpu.vector_store %arg8[%c0_77, %c0_78], %25 {strides = array<i32>} : memref<8x128xf32, #tpu.memory_space<vmem>>, vector<8x128xf32>,
    } else {
    }
    %c1_i32 = arith.constant 1 : i32
    %36 = arith.index_cast %c1_i32 : i32 to index
    %c0_13 = arith.constant 0 : index
    %c0_14 = arith.constant 0 : index
    %37 = vector.load %arg2[%36, %c0_13, %c0_14] : memref<8x8x512xf32, #tpu.memory_space<vmem>>, vector<1x8x512xf32>
    %38 = vector.shape_cast %37 : vector<1x8x512xf32> to vector<8x512xf32>
    %cst_15 = arith.constant dense<0.000000e+00> : vector<8x512xf32>
    %39 = tpu.matmul %27, %3, %cst_15 {dimension_numbers = #tpu.dot_dimension_numbers<[1], [0], [0], [1], [0, 0, 1, 1], [], []>} : vector<8x128xf32>, vector<128x512xf32>, vector<8x512xf32> -> vector<8x512xf32>
    %40 = arith.addf %38, %39 : vector<8x512xf32>
    %41 = vector.extract_strided_slice %40 {offsets = [0, 0], sizes = [8, 384], strides = [1, 1]} : vector<8x512xf32> to vector<8x384xf32>
    %42 = arith.negf %41 : vector<8x384xf32>
    %43 = math.exp %42 : vector<8x384xf32>
    %cst_16 = arith.constant 1.000000e+00 : f32
    %44 = vector.broadcast %cst_16 : f32 to vector<8x384xf32>
    %45 = arith.addf %44, %43 : vector<8x384xf32>
    %46 = arith.divf %44, %45 : vector<8x384xf32>
    %47 = vector.extract_strided_slice %46 {offsets = [0, 0], sizes = [8, 128], strides = [1, 1]} : vector<8x384xf32> to vector<8x128xf32>
    %48 = vector.extract_strided_slice %46 {offsets = [0, 128], sizes = [8, 128], strides = [1, 1]} : vector<8x384xf32> to vector<8x128xf32>
    %49 = vector.extract_strided_slice %46 {offsets = [0, 256], sizes = [8, 128], strides = [1, 1]} : vector<8x384xf32> to vector<8x128xf32>
    %50 = vector.extract_strided_slice %40 {offsets = [0, 384], sizes = [8, 128], strides = [1, 1]} : vector<8x512xf32> to vector<8x128xf32>
    %51 = math.tanh %50 : vector<8x128xf32>
    %52 = arith.mulf %47, %25 : vector<8x128xf32>
    %53 = arith.mulf %48, %51 : vector<8x128xf32>
    %54 = arith.addf %52, %53 : vector<8x128xf32>
    %55 = math.tanh %54 : vector<8x128xf32>
    %56 = arith.mulf %49, %55 : vector<8x128xf32>
    %57 = arith.index_cast %c1_i32 : i32 to index
    %c0_17 = arith.constant 0 : index
    %c0_18 = arith.constant 0 : index
    %58 = vector.load %arg6[%57, %c0_17, %c0_18] : memref<8x8x128xf32, #tpu.memory_space<vmem>>, vector<1x8x128xf32>
    %59 = vector.shape_cast %58 : vector<1x8x128xf32> to vector<8x128xf32>
    %60 = vector.shape_cast %56 : vector<8x128xf32> to vector<1x8x128xf32>
    tpu.vector_store %arg6[%57, %c0_17, %c0_18], %60 {strides = array<i32>} : memref<8x8x128xf32, #tpu.memory_space<vmem>>, vector<1x8x128xf32>,
    %61 = arith.addi %4, %c1_i32 : i32
    %c7_i32_19 = arith.constant 7 : i32
    %62 = arith.cmpi eq, %61, %c7_i32_19 : i32
    %63 = arith.extui %62 : i1 to i32
    %c0_i32_20 = arith.constant 0 : i32
    %64 = arith.cmpi ne, %63, %c0_i32_20 : i32
    scf.if %64 {
      %c0_75 = arith.constant 0 : index
      %c0_76 = arith.constant 0 : index
      %241 = vector.load %arg7[%c0_75, %c0_76] : memref<8x128xf32, #tpu.memory_space<vmem>>, vector<8x128xf32>
      tpu.vector_store %arg7[%c0_75, %c0_76], %56 {strides = array<i32>} : memref<8x128xf32, #tpu.memory_space<vmem>>, vector<8x128xf32>,
      %c0_77 = arith.constant 0 : index
      %c0_78 = arith.constant 0 : index
      %242 = vector.load %arg8[%c0_77, %c0_78] : memref<8x128xf32, #tpu.memory_space<vmem>>, vector<8x128xf32>
      tpu.vector_store %arg8[%c0_77, %c0_78], %54 {strides = array<i32>} : memref<8x128xf32, #tpu.memory_space<vmem>>, vector<8x128xf32>,
    } else {
    }
    %c2_i32 = arith.constant 2 : i32
    %65 = arith.index_cast %c2_i32 : i32 to index
    %c0_21 = arith.constant 0 : index
    %c0_22 = arith.constant 0 : index
    %66 = vector.load %arg2[%65, %c0_21, %c0_22] : memref<8x8x512xf32, #tpu.memory_space<vmem>>, vector<1x8x512xf32>
    %67 = vector.shape_cast %66 : vector<1x8x512xf32> to vector<8x512xf32>
    %cst_23 = arith.constant dense<0.000000e+00> : vector<8x512xf32>
    %68 = tpu.matmul %56, %3, %cst_23 {dimension_numbers = #tpu.dot_dimension_numbers<[1], [0], [0], [1], [0, 0, 1, 1], [], []>} : vector<8x128xf32>, vector<128x512xf32>, vector<8x512xf32> -> vector<8x512xf32>
    %69 = arith.addf %67, %68 : vector<8x512xf32>
    %70 = vector.extract_strided_slice %69 {offsets = [0, 0], sizes = [8, 384], strides = [1, 1]} : vector<8x512xf32> to vector<8x384xf32>
    %71 = arith.negf %70 : vector<8x384xf32>
    %72 = math.exp %71 : vector<8x384xf32>
    %cst_24 = arith.constant 1.000000e+00 : f32
    %73 = vector.broadcast %cst_24 : f32 to vector<8x384xf32>
    %74 = arith.addf %73, %72 : vector<8x384xf32>
    %75 = arith.divf %73, %74 : vector<8x384xf32>
    %76 = vector.extract_strided_slice %75 {offsets = [0, 0], sizes = [8, 128], strides = [1, 1]} : vector<8x384xf32> to vector<8x128xf32>
    %77 = vector.extract_strided_slice %75 {offsets = [0, 128], sizes = [8, 128], strides = [1, 1]} : vector<8x384xf32> to vector<8x128xf32>
    %78 = vector.extract_strided_slice %75 {offsets = [0, 256], sizes = [8, 128], strides = [1, 1]} : vector<8x384xf32> to vector<8x128xf32>
    %79 = vector.extract_strided_slice %69 {offsets = [0, 384], sizes = [8, 128], strides = [1, 1]} : vector<8x512xf32> to vector<8x128xf32>
    %80 = math.tanh %79 : vector<8x128xf32>
    %81 = arith.mulf %76, %54 : vector<8x128xf32>
    %82 = arith.mulf %77, %80 : vector<8x128xf32>
    %83 = arith.addf %81, %82 : vector<8x128xf32>
    %84 = math.tanh %83 : vector<8x128xf32>
    %85 = arith.mulf %78, %84 : vector<8x128xf32>
    %86 = arith.index_cast %c2_i32 : i32 to index
    %c0_25 = arith.constant 0 : index
    %c0_26 = arith.constant 0 : index
    %87 = vector.load %arg6[%86, %c0_25, %c0_26] : memref<8x8x128xf32, #tpu.memory_space<vmem>>, vector<1x8x128xf32>
    %88 = vector.shape_cast %87 : vector<1x8x128xf32> to vector<8x128xf32>
    %89 = vector.shape_cast %85 : vector<8x128xf32> to vector<1x8x128xf32>
    tpu.vector_store %arg6[%86, %c0_25, %c0_26], %89 {strides = array<i32>} : memref<8x8x128xf32, #tpu.memory_space<vmem>>, vector<1x8x128xf32>,
    %90 = arith.addi %4, %c2_i32 : i32
    %c7_i32_27 = arith.constant 7 : i32
    %91 = arith.cmpi eq, %90, %c7_i32_27 : i32
    %92 = arith.extui %91 : i1 to i32
    %c0_i32_28 = arith.constant 0 : i32
    %93 = arith.cmpi ne, %92, %c0_i32_28 : i32
    scf.if %93 {
      %c0_75 = arith.constant 0 : index
      %c0_76 = arith.constant 0 : index
      %241 = vector.load %arg7[%c0_75, %c0_76] : memref<8x128xf32, #tpu.memory_space<vmem>>, vector<8x128xf32>
      tpu.vector_store %arg7[%c0_75, %c0_76], %85 {strides = array<i32>} : memref<8x128xf32, #tpu.memory_space<vmem>>, vector<8x128xf32>,
      %c0_77 = arith.constant 0 : index
      %c0_78 = arith.constant 0 : index
      %242 = vector.load %arg8[%c0_77, %c0_78] : memref<8x128xf32, #tpu.memory_space<vmem>>, vector<8x128xf32>
      tpu.vector_store %arg8[%c0_77, %c0_78], %83 {strides = array<i32>} : memref<8x128xf32, #tpu.memory_space<vmem>>, vector<8x128xf32>,
    } else {
    }
    %c3_i32 = arith.constant 3 : i32
    %94 = arith.index_cast %c3_i32 : i32 to index
    %c0_29 = arith.constant 0 : index
    %c0_30 = arith.constant 0 : index
    %95 = vector.load %arg2[%94, %c0_29, %c0_30] : memref<8x8x512xf32, #tpu.memory_space<vmem>>, vector<1x8x512xf32>
    %96 = vector.shape_cast %95 : vector<1x8x512xf32> to vector<8x512xf32>
    %cst_31 = arith.constant dense<0.000000e+00> : vector<8x512xf32>
    %97 = tpu.matmul %85, %3, %cst_31 {dimension_numbers = #tpu.dot_dimension_numbers<[1], [0], [0], [1], [0, 0, 1, 1], [], []>} : vector<8x128xf32>, vector<128x512xf32>, vector<8x512xf32> -> vector<8x512xf32>
    %98 = arith.addf %96, %97 : vector<8x512xf32>
    %99 = vector.extract_strided_slice %98 {offsets = [0, 0], sizes = [8, 384], strides = [1, 1]} : vector<8x512xf32> to vector<8x384xf32>
    %100 = arith.negf %99 : vector<8x384xf32>
    %101 = math.exp %100 : vector<8x384xf32>
    %cst_32 = arith.constant 1.000000e+00 : f32
    %102 = vector.broadcast %cst_32 : f32 to vector<8x384xf32>
    %103 = arith.addf %102, %101 : vector<8x384xf32>
    %104 = arith.divf %102, %103 : vector<8x384xf32>
    %105 = vector.extract_strided_slice %104 {offsets = [0, 0], sizes = [8, 128], strides = [1, 1]} : vector<8x384xf32> to vector<8x128xf32>
    %106 = vector.extract_strided_slice %104 {offsets = [0, 128], sizes = [8, 128], strides = [1, 1]} : vector<8x384xf32> to vector<8x128xf32>
    %107 = vector.extract_strided_slice %104 {offsets = [0, 256], sizes = [8, 128], strides = [1, 1]} : vector<8x384xf32> to vector<8x128xf32>
    %108 = vector.extract_strided_slice %98 {offsets = [0, 384], sizes = [8, 128], strides = [1, 1]} : vector<8x512xf32> to vector<8x128xf32>
    %109 = math.tanh %108 : vector<8x128xf32>
    %110 = arith.mulf %105, %83 : vector<8x128xf32>
    %111 = arith.mulf %106, %109 : vector<8x128xf32>
    %112 = arith.addf %110, %111 : vector<8x128xf32>
    %113 = math.tanh %112 : vector<8x128xf32>
    %114 = arith.mulf %107, %113 : vector<8x128xf32>
    %115 = arith.index_cast %c3_i32 : i32 to index
    %c0_33 = arith.constant 0 : index
    %c0_34 = arith.constant 0 : index
    %116 = vector.load %arg6[%115, %c0_33, %c0_34] : memref<8x8x128xf32, #tpu.memory_space<vmem>>, vector<1x8x128xf32>
    %117 = vector.shape_cast %116 : vector<1x8x128xf32> to vector<8x128xf32>
    %118 = vector.shape_cast %114 : vector<8x128xf32> to vector<1x8x128xf32>
    tpu.vector_store %arg6[%115, %c0_33, %c0_34], %118 {strides = array<i32>} : memref<8x8x128xf32, #tpu.memory_space<vmem>>, vector<1x8x128xf32>,
    %119 = arith.addi %4, %c3_i32 : i32
    %c7_i32_35 = arith.constant 7 : i32
    %120 = arith.cmpi eq, %119, %c7_i32_35 : i32
    %121 = arith.extui %120 : i1 to i32
    %c0_i32_36 = arith.constant 0 : i32
    %122 = arith.cmpi ne, %121, %c0_i32_36 : i32
    scf.if %122 {
      %c0_75 = arith.constant 0 : index
      %c0_76 = arith.constant 0 : index
      %241 = vector.load %arg7[%c0_75, %c0_76] : memref<8x128xf32, #tpu.memory_space<vmem>>, vector<8x128xf32>
      tpu.vector_store %arg7[%c0_75, %c0_76], %114 {strides = array<i32>} : memref<8x128xf32, #tpu.memory_space<vmem>>, vector<8x128xf32>,
      %c0_77 = arith.constant 0 : index
      %c0_78 = arith.constant 0 : index
      %242 = vector.load %arg8[%c0_77, %c0_78] : memref<8x128xf32, #tpu.memory_space<vmem>>, vector<8x128xf32>
      tpu.vector_store %arg8[%c0_77, %c0_78], %112 {strides = array<i32>} : memref<8x128xf32, #tpu.memory_space<vmem>>, vector<8x128xf32>,
    } else {
    }
    %c4_i32 = arith.constant 4 : i32
    %123 = arith.index_cast %c4_i32 : i32 to index
    %c0_37 = arith.constant 0 : index
    %c0_38 = arith.constant 0 : index
    %124 = vector.load %arg2[%123, %c0_37, %c0_38] : memref<8x8x512xf32, #tpu.memory_space<vmem>>, vector<1x8x512xf32>
    %125 = vector.shape_cast %124 : vector<1x8x512xf32> to vector<8x512xf32>
    %cst_39 = arith.constant dense<0.000000e+00> : vector<8x512xf32>
    %126 = tpu.matmul %114, %3, %cst_39 {dimension_numbers = #tpu.dot_dimension_numbers<[1], [0], [0], [1], [0, 0, 1, 1], [], []>} : vector<8x128xf32>, vector<128x512xf32>, vector<8x512xf32> -> vector<8x512xf32>
    %127 = arith.addf %125, %126 : vector<8x512xf32>
    %128 = vector.extract_strided_slice %127 {offsets = [0, 0], sizes = [8, 384], strides = [1, 1]} : vector<8x512xf32> to vector<8x384xf32>
    %129 = arith.negf %128 : vector<8x384xf32>
    %130 = math.exp %129 : vector<8x384xf32>
    %cst_40 = arith.constant 1.000000e+00 : f32
    %131 = vector.broadcast %cst_40 : f32 to vector<8x384xf32>
    %132 = arith.addf %131, %130 : vector<8x384xf32>
    %133 = arith.divf %131, %132 : vector<8x384xf32>
    %134 = vector.extract_strided_slice %133 {offsets = [0, 0], sizes = [8, 128], strides = [1, 1]} : vector<8x384xf32> to vector<8x128xf32>
    %135 = vector.extract_strided_slice %133 {offsets = [0, 128], sizes = [8, 128], strides = [1, 1]} : vector<8x384xf32> to vector<8x128xf32>
    %136 = vector.extract_strided_slice %133 {offsets = [0, 256], sizes = [8, 128], strides = [1, 1]} : vector<8x384xf32> to vector<8x128xf32>
    %137 = vector.extract_strided_slice %127 {offsets = [0, 384], sizes = [8, 128], strides = [1, 1]} : vector<8x512xf32> to vector<8x128xf32>
    %138 = math.tanh %137 : vector<8x128xf32>
    %139 = arith.mulf %134, %112 : vector<8x128xf32>
    %140 = arith.mulf %135, %138 : vector<8x128xf32>
    %141 = arith.addf %139, %140 : vector<8x128xf32>
    %142 = math.tanh %141 : vector<8x128xf32>
    %143 = arith.mulf %136, %142 : vector<8x128xf32>
    %144 = arith.index_cast %c4_i32 : i32 to index
    %c0_41 = arith.constant 0 : index
    %c0_42 = arith.constant 0 : index
    %145 = vector.load %arg6[%144, %c0_41, %c0_42] : memref<8x8x128xf32, #tpu.memory_space<vmem>>, vector<1x8x128xf32>
    %146 = vector.shape_cast %145 : vector<1x8x128xf32> to vector<8x128xf32>
    %147 = vector.shape_cast %143 : vector<8x128xf32> to vector<1x8x128xf32>
    tpu.vector_store %arg6[%144, %c0_41, %c0_42], %147 {strides = array<i32>} : memref<8x8x128xf32, #tpu.memory_space<vmem>>, vector<1x8x128xf32>,
    %148 = arith.addi %4, %c4_i32 : i32
    %c7_i32_43 = arith.constant 7 : i32
    %149 = arith.cmpi eq, %148, %c7_i32_43 : i32
    %150 = arith.extui %149 : i1 to i32
    %c0_i32_44 = arith.constant 0 : i32
    %151 = arith.cmpi ne, %150, %c0_i32_44 : i32
    scf.if %151 {
      %c0_75 = arith.constant 0 : index
      %c0_76 = arith.constant 0 : index
      %241 = vector.load %arg7[%c0_75, %c0_76] : memref<8x128xf32, #tpu.memory_space<vmem>>, vector<8x128xf32>
      tpu.vector_store %arg7[%c0_75, %c0_76], %143 {strides = array<i32>} : memref<8x128xf32, #tpu.memory_space<vmem>>, vector<8x128xf32>,
      %c0_77 = arith.constant 0 : index
      %c0_78 = arith.constant 0 : index
      %242 = vector.load %arg8[%c0_77, %c0_78] : memref<8x128xf32, #tpu.memory_space<vmem>>, vector<8x128xf32>
      tpu.vector_store %arg8[%c0_77, %c0_78], %141 {strides = array<i32>} : memref<8x128xf32, #tpu.memory_space<vmem>>, vector<8x128xf32>,
    } else {
    }
    %c5_i32 = arith.constant 5 : i32
    %152 = arith.index_cast %c5_i32 : i32 to index
    %c0_45 = arith.constant 0 : index
    %c0_46 = arith.constant 0 : index
    %153 = vector.load %arg2[%152, %c0_45, %c0_46] : memref<8x8x512xf32, #tpu.memory_space<vmem>>, vector<1x8x512xf32>
    %154 = vector.shape_cast %153 : vector<1x8x512xf32> to vector<8x512xf32>
    %cst_47 = arith.constant dense<0.000000e+00> : vector<8x512xf32>
    %155 = tpu.matmul %143, %3, %cst_47 {dimension_numbers = #tpu.dot_dimension_numbers<[1], [0], [0], [1], [0, 0, 1, 1], [], []>} : vector<8x128xf32>, vector<128x512xf32>, vector<8x512xf32> -> vector<8x512xf32>
    %156 = arith.addf %154, %155 : vector<8x512xf32>
    %157 = vector.extract_strided_slice %156 {offsets = [0, 0], sizes = [8, 384], strides = [1, 1]} : vector<8x512xf32> to vector<8x384xf32>
    %158 = arith.negf %157 : vector<8x384xf32>
    %159 = math.exp %158 : vector<8x384xf32>
    %cst_48 = arith.constant 1.000000e+00 : f32
    %160 = vector.broadcast %cst_48 : f32 to vector<8x384xf32>
    %161 = arith.addf %160, %159 : vector<8x384xf32>
    %162 = arith.divf %160, %161 : vector<8x384xf32>
    %163 = vector.extract_strided_slice %162 {offsets = [0, 0], sizes = [8, 128], strides = [1, 1]} : vector<8x384xf32> to vector<8x128xf32>
    %164 = vector.extract_strided_slice %162 {offsets = [0, 128], sizes = [8, 128], strides = [1, 1]} : vector<8x384xf32> to vector<8x128xf32>
    %165 = vector.extract_strided_slice %162 {offsets = [0, 256], sizes = [8, 128], strides = [1, 1]} : vector<8x384xf32> to vector<8x128xf32>
    %166 = vector.extract_strided_slice %156 {offsets = [0, 384], sizes = [8, 128], strides = [1, 1]} : vector<8x512xf32> to vector<8x128xf32>
    %167 = math.tanh %166 : vector<8x128xf32>
    %168 = arith.mulf %163, %141 : vector<8x128xf32>
    %169 = arith.mulf %164, %167 : vector<8x128xf32>
    %170 = arith.addf %168, %169 : vector<8x128xf32>
    %171 = math.tanh %170 : vector<8x128xf32>
    %172 = arith.mulf %165, %171 : vector<8x128xf32>
    %173 = arith.index_cast %c5_i32 : i32 to index
    %c0_49 = arith.constant 0 : index
    %c0_50 = arith.constant 0 : index
    %174 = vector.load %arg6[%173, %c0_49, %c0_50] : memref<8x8x128xf32, #tpu.memory_space<vmem>>, vector<1x8x128xf32>
    %175 = vector.shape_cast %174 : vector<1x8x128xf32> to vector<8x128xf32>
    %176 = vector.shape_cast %172 : vector<8x128xf32> to vector<1x8x128xf32>
    tpu.vector_store %arg6[%173, %c0_49, %c0_50], %176 {strides = array<i32>} : memref<8x8x128xf32, #tpu.memory_space<vmem>>, vector<1x8x128xf32>,
    %177 = arith.addi %4, %c5_i32 : i32
    %c7_i32_51 = arith.constant 7 : i32
    %178 = arith.cmpi eq, %177, %c7_i32_51 : i32
    %179 = arith.extui %178 : i1 to i32
    %c0_i32_52 = arith.constant 0 : i32
    %180 = arith.cmpi ne, %179, %c0_i32_52 : i32
    scf.if %180 {
      %c0_75 = arith.constant 0 : index
      %c0_76 = arith.constant 0 : index
      %241 = vector.load %arg7[%c0_75, %c0_76] : memref<8x128xf32, #tpu.memory_space<vmem>>, vector<8x128xf32>
      tpu.vector_store %arg7[%c0_75, %c0_76], %172 {strides = array<i32>} : memref<8x128xf32, #tpu.memory_space<vmem>>, vector<8x128xf32>,
      %c0_77 = arith.constant 0 : index
      %c0_78 = arith.constant 0 : index
      %242 = vector.load %arg8[%c0_77, %c0_78] : memref<8x128xf32, #tpu.memory_space<vmem>>, vector<8x128xf32>
      tpu.vector_store %arg8[%c0_77, %c0_78], %170 {strides = array<i32>} : memref<8x128xf32, #tpu.memory_space<vmem>>, vector<8x128xf32>,
    } else {
    }
    %c6_i32 = arith.constant 6 : i32
    %181 = arith.index_cast %c6_i32 : i32 to index
    %c0_53 = arith.constant 0 : index
    %c0_54 = arith.constant 0 : index
    %182 = vector.load %arg2[%181, %c0_53, %c0_54] : memref<8x8x512xf32, #tpu.memory_space<vmem>>, vector<1x8x512xf32>
    %183 = vector.shape_cast %182 : vector<1x8x512xf32> to vector<8x512xf32>
    %cst_55 = arith.constant dense<0.000000e+00> : vector<8x512xf32>
    %184 = tpu.matmul %172, %3, %cst_55 {dimension_numbers = #tpu.dot_dimension_numbers<[1], [0], [0], [1], [0, 0, 1, 1], [], []>} : vector<8x128xf32>, vector<128x512xf32>, vector<8x512xf32> -> vector<8x512xf32>
    %185 = arith.addf %183, %184 : vector<8x512xf32>
    %186 = vector.extract_strided_slice %185 {offsets = [0, 0], sizes = [8, 384], strides = [1, 1]} : vector<8x512xf32> to vector<8x384xf32>
    %187 = arith.negf %186 : vector<8x384xf32>
    %188 = math.exp %187 : vector<8x384xf32>
    %cst_56 = arith.constant 1.000000e+00 : f32
    %189 = vector.broadcast %cst_56 : f32 to vector<8x384xf32>
    %190 = arith.addf %189, %188 : vector<8x384xf32>
    %191 = arith.divf %189, %190 : vector<8x384xf32>
    %192 = vector.extract_strided_slice %191 {offsets = [0, 0], sizes = [8, 128], strides = [1, 1]} : vector<8x384xf32> to vector<8x128xf32>
    %193 = vector.extract_strided_slice %191 {offsets = [0, 128], sizes = [8, 128], strides = [1, 1]} : vector<8x384xf32> to vector<8x128xf32>
    %194 = vector.extract_strided_slice %191 {offsets = [0, 256], sizes = [8, 128], strides = [1, 1]} : vector<8x384xf32> to vector<8x128xf32>
    %195 = vector.extract_strided_slice %185 {offsets = [0, 384], sizes = [8, 128], strides = [1, 1]} : vector<8x512xf32> to vector<8x128xf32>
    %196 = math.tanh %195 : vector<8x128xf32>
    %197 = arith.mulf %192, %170 : vector<8x128xf32>
    %198 = arith.mulf %193, %196 : vector<8x128xf32>
    %199 = arith.addf %197, %198 : vector<8x128xf32>
    %200 = math.tanh %199 : vector<8x128xf32>
    %201 = arith.mulf %194, %200 : vector<8x128xf32>
    %202 = arith.index_cast %c6_i32 : i32 to index
    %c0_57 = arith.constant 0 : index
    %c0_58 = arith.constant 0 : index
    %203 = vector.load %arg6[%202, %c0_57, %c0_58] : memref<8x8x128xf32, #tpu.memory_space<vmem>>, vector<1x8x128xf32>
    %204 = vector.shape_cast %203 : vector<1x8x128xf32> to vector<8x128xf32>
    %205 = vector.shape_cast %201 : vector<8x128xf32> to vector<1x8x128xf32>
    tpu.vector_store %arg6[%202, %c0_57, %c0_58], %205 {strides = array<i32>} : memref<8x8x128xf32, #tpu.memory_space<vmem>>, vector<1x8x128xf32>,
    %206 = arith.addi %4, %c6_i32 : i32
    %c7_i32_59 = arith.constant 7 : i32
    %207 = arith.cmpi eq, %206, %c7_i32_59 : i32
    %208 = arith.extui %207 : i1 to i32
    %c0_i32_60 = arith.constant 0 : i32
    %209 = arith.cmpi ne, %208, %c0_i32_60 : i32
    scf.if %209 {
      %c0_75 = arith.constant 0 : index
      %c0_76 = arith.constant 0 : index
      %241 = vector.load %arg7[%c0_75, %c0_76] : memref<8x128xf32, #tpu.memory_space<vmem>>, vector<8x128xf32>
      tpu.vector_store %arg7[%c0_75, %c0_76], %201 {strides = array<i32>} : memref<8x128xf32, #tpu.memory_space<vmem>>, vector<8x128xf32>,
      %c0_77 = arith.constant 0 : index
      %c0_78 = arith.constant 0 : index
      %242 = vector.load %arg8[%c0_77, %c0_78] : memref<8x128xf32, #tpu.memory_space<vmem>>, vector<8x128xf32>
      tpu.vector_store %arg8[%c0_77, %c0_78], %199 {strides = array<i32>} : memref<8x128xf32, #tpu.memory_space<vmem>>, vector<8x128xf32>,
    } else {
    }
    %c7_i32_61 = arith.constant 7 : i32
    %210 = arith.index_cast %c7_i32_61 : i32 to index
    %c0_62 = arith.constant 0 : index
    %c0_63 = arith.constant 0 : index
    %211 = vector.load %arg2[%210, %c0_62, %c0_63] : memref<8x8x512xf32, #tpu.memory_space<vmem>>, vector<1x8x512xf32>
    %212 = vector.shape_cast %211 : vector<1x8x512xf32> to vector<8x512xf32>
    %cst_64 = arith.constant dense<0.000000e+00> : vector<8x512xf32>
    %213 = tpu.matmul %201, %3, %cst_64 {dimension_numbers = #tpu.dot_dimension_numbers<[1], [0], [0], [1], [0, 0, 1, 1], [], []>} : vector<8x128xf32>, vector<128x512xf32>, vector<8x512xf32> -> vector<8x512xf32>
    %214 = arith.addf %212, %213 : vector<8x512xf32>
    %215 = vector.extract_strided_slice %214 {offsets = [0, 0], sizes = [8, 384], strides = [1, 1]} : vector<8x512xf32> to vector<8x384xf32>
    %216 = arith.negf %215 : vector<8x384xf32>
    %217 = math.exp %216 : vector<8x384xf32>
    %cst_65 = arith.constant 1.000000e+00 : f32
    %218 = vector.broadcast %cst_65 : f32 to vector<8x384xf32>
    %219 = arith.addf %218, %217 : vector<8x384xf32>
    %220 = arith.divf %218, %219 : vector<8x384xf32>
    %221 = vector.extract_strided_slice %220 {offsets = [0, 0], sizes = [8, 128], strides = [1, 1]} : vector<8x384xf32> to vector<8x128xf32>
    %222 = vector.extract_strided_slice %220 {offsets = [0, 128], sizes = [8, 128], strides = [1, 1]} : vector<8x384xf32> to vector<8x128xf32>
    %223 = vector.extract_strided_slice %220 {offsets = [0, 256], sizes = [8, 128], strides = [1, 1]} : vector<8x384xf32> to vector<8x128xf32>
    %224 = vector.extract_strided_slice %214 {offsets = [0, 384], sizes = [8, 128], strides = [1, 1]} : vector<8x512xf32> to vector<8x128xf32>
    %225 = math.tanh %224 : vector<8x128xf32>
    %226 = arith.mulf %221, %199 : vector<8x128xf32>
    %227 = arith.mulf %222, %225 : vector<8x128xf32>
    %228 = arith.addf %226, %227 : vector<8x128xf32>
    %229 = math.tanh %228 : vector<8x128xf32>
    %230 = arith.mulf %223, %229 : vector<8x128xf32>
    %231 = arith.index_cast %c7_i32_61 : i32 to index
    %c0_66 = arith.constant 0 : index
    %c0_67 = arith.constant 0 : index
    %232 = vector.load %arg6[%231, %c0_66, %c0_67] : memref<8x8x128xf32, #tpu.memory_space<vmem>>, vector<1x8x128xf32>
    %233 = vector.shape_cast %232 : vector<1x8x128xf32> to vector<8x128xf32>
    %234 = vector.shape_cast %230 : vector<8x128xf32> to vector<1x8x128xf32>
    tpu.vector_store %arg6[%231, %c0_66, %c0_67], %234 {strides = array<i32>} : memref<8x8x128xf32, #tpu.memory_space<vmem>>, vector<1x8x128xf32>,
    %235 = arith.addi %4, %c7_i32_61 : i32
    %c7_i32_68 = arith.constant 7 : i32
    %236 = arith.cmpi eq, %235, %c7_i32_68 : i32
    %237 = arith.extui %236 : i1 to i32
    %c0_i32_69 = arith.constant 0 : i32
    %238 = arith.cmpi ne, %237, %c0_i32_69 : i32
    scf.if %238 {
      %c0_75 = arith.constant 0 : index
      %c0_76 = arith.constant 0 : index
      %241 = vector.load %arg7[%c0_75, %c0_76] : memref<8x128xf32, #tpu.memory_space<vmem>>, vector<8x128xf32>
      tpu.vector_store %arg7[%c0_75, %c0_76], %230 {strides = array<i32>} : memref<8x128xf32, #tpu.memory_space<vmem>>, vector<8x128xf32>,
      %c0_77 = arith.constant 0 : index
      %c0_78 = arith.constant 0 : index
      %242 = vector.load %arg8[%c0_77, %c0_78] : memref<8x128xf32, #tpu.memory_space<vmem>>, vector<8x128xf32>
      tpu.vector_store %arg8[%c0_77, %c0_78], %228 {strides = array<i32>} : memref<8x128xf32, #tpu.memory_space<vmem>>, vector<8x128xf32>,
    } else {
    }
    %c8_i32_70 = arith.constant 8 : i32
    %c0_71 = arith.constant 0 : index
    %c0_72 = arith.constant 0 : index
    %239 = vector.load %arg10[%c0_71, %c0_72] : memref<8x128xf32, #tpu.memory_space<vmem>>, vector<8x128xf32>
    tpu.vector_store %arg10[%c0_71, %c0_72], %230 {strides = array<i32>} : memref<8x128xf32, #tpu.memory_space<vmem>>, vector<8x128xf32>,
    %c0_73 = arith.constant 0 : index
    %c0_74 = arith.constant 0 : index
    %240 = vector.load %arg11[%c0_73, %c0_74] : memref<8x128xf32, #tpu.memory_space<vmem>>, vector<8x128xf32>
    tpu.vector_store %arg11[%c0_73, %c0_74], %228 {strides = array<i32>} : memref<8x128xf32, #tpu.memory_space<vmem>>, vector<8x128xf32>,
    return
  }
  func.func @transform_0(%arg0: i32, %arg1: i32) -> (i32, i32, i32) {
    %c0_i32 = arith.constant 0 : i32
    %c0_i32_0 = arith.constant 0 : i32
    return %arg1, %arg0, %c0_i32 : i32, i32, i32
  }
  func.func @transform_4(%arg0: i32, %arg1: i32) -> (i32, i32, i32) {
    %c0_i32 = arith.constant 0 : i32
    %c0_i32_0 = arith.constant 0 : i32
    return %arg1, %arg0, %c0_i32 : i32, i32, i32
  }
  func.func @transform_5(%arg0: i32, %arg1: i32) -> (i32, i32) {
    %c0_i32 = arith.constant 0 : i32
    %c0_i32_0 = arith.constant 0 : i32
    return %arg0, %c0_i32 : i32, i32
  }
  func.func @transform_6(%arg0: i32, %arg1: i32) -> (i32, i32) {
    %c0_i32 = arith.constant 0 : i32
    %c0_i32_0 = arith.constant 0 : i32
    return %arg0, %c0_i32 : i32, i32
  }
}

</mosaic_0001>

<llo_original>
// kernel: tpu_custom_call.1
$region0: #{tpu_custom_call.1}
  #allocation0 [shape = 'u32[]', space=smem, size = 0x4, offset = 0x4, fixed_abs, tag = 'smem constant byte address 0x4 - core index']
  #allocation1 [shape = 'u32[144,128]{1,0:T(1,128)}', space=vmem, size = 0x12000, scoped, tag = 'internal scratch']
  #allocation2 [shape = 'f32[128,512]{1,0:T(8,128)}', space=vmem, size = 0x40000, scoped, tag = 'scratch operand']
  #allocation3 [shape = 'f32[8,128]{1,0:T(8,128)}', space=vmem, size = 0x1000, scoped, tag = 'scratch operand']
  #allocation4 [shape = 'f32[8,128]{1,0:T(8,128)}', space=vmem, size = 0x1000, scoped, tag = 'scratch operand']
  #allocation13 [shape = 's32[]', space=sflag, size = 0x4, offset = 0, fixed_abs, tag = 'sflag constant byte address 0x0 - dummy sync flag']
  #allocation14 [shape = 's32[]', space=sflag, size = 0x4, offset = 0, fixed_abs, tag = 'sflag constant byte address 0x0 - dummy sync flag']
  #allocation15 [shape = 'u32[]', space=smem, size = 0x4, offset = 0x44, fixed_abs, tag = 'smem constant byte address 0x44 - assertion arg 0']
  #allocation16 [shape = 'u32[]', space=smem, size = 0x4, offset = 0x48, fixed_abs, tag = 'smem constant byte address 0x48 - assertion arg 1']
  #allocation18 [shape = 's32[]', space=sflag, size = 0x4, offset = 0, fixed_abs, tag = 'sflag constant byte address 0x0 - dummy sync flag']
  #allocation19 [shape = 's32[]', space=sflag, size = 0x4, offset = 0, fixed_abs, tag = 'sflag constant byte address 0x0 - dummy sync flag']
  #allocation21 [shape = 's32[]', space=sflag, size = 0x4, offset = 0, fixed_abs, tag = 'sflag constant byte address 0x0 - dummy sync flag']
  %s0 = inlined_call_operand.hbm [shape: f32[8,8,512], index: 0, kind: input, shape index: {}]
  %s1 = inlined_call_operand.hbm [shape: f32[128,512], index: 1, kind: input, shape index: {}]
  %s2 = inlined_call_operand.hbm [shape: f32[8,128], index: 2, kind: input, shape index: {}]
  %s3 = inlined_call_operand.vmem [shape: f32[8,128], index: 3, kind: input, shape index: {}]
  %s4 = inlined_call_operand.hbm [shape: f32[8,8,128], index: 4, kind: output, shape index: {0}]
  %s5 = inlined_call_operand.hbm [shape: f32[8,128], index: 5, kind: output, shape index: {1}]
  %s6 = inlined_call_operand.hbm [shape: f32[8,128], index: 6, kind: output, shape index: {2}]
  %7 = xla_tuple %s4, %s5, %s6
  %s8 = sld [smem:[#allocation0]]
  $region115: #{tpu_custom_call.1} parent=0
    _
  %s10 = ssub.s32 1, %s8
  %s11 = scalar_select 0, %s10, %s8
  $region1: #{tpu_custom_call.1} parent=0
    #allocation5 [shape = 'u8[131072]{0}', space=vmem, size = 0x20000, scoped, tag = 'input window, operand 0, single buffered']
    #allocation6 [shape = 's32[1]{0}', space=sflag, size = 0x4, scoped, tag = 'scoped memory for tpu_custom_call.1']
    #allocation7 [shape = 's32[1]{0}', space=sflag, size = 0x4, scoped, tag = 'scoped memory for tpu_custom_call.1']
    #allocation8 [shape = 'u8[32768]{0}', space=vmem, size = 0x8000, scoped, tag = 'output window, operand 0, single buffered']
    #allocation9 [shape = 'u8[4096]{0}', space=vmem, size = 0x1000, scoped, tag = 'output window, operand 1, single buffered']
    #allocation10 [shape = 's32[1]{0}', space=sflag, size = 0x4, scoped, tag = 'scoped memory for tpu_custom_call.1']
    #allocation11 [shape = 'u8[4096]{0}', space=vmem, size = 0x1000, scoped, tag = 'output window, operand 2, single buffered']
    %12 = vsyncpa [#allocation6], 0
    %13 = vsyncpa [#allocation7], 0
    %14 = vsyncpa [#allocation10], 0
    // Predicated region
    $region2: #{tpu_custom_call.1} parent=1 // pred_check
      _
    $region3: #{tpu_custom_call.1} parent=1 // pred_check_branch
      %16 = sbr.rel (0) target = $region5
    $region4: #{tpu_custom_call.1} parent=1 // pred_region
      %s18 = ssub.s32 4096, 4096
      %19 = vsyncadd [#allocation6], %s18
      %s20 = sshll.u32 [#allocation5], 4
      %s21 = int_to_ptr.vmem [resolvable:$true] %s20
      %26 = dma.hbm_to_vmem [thread:$0]  %s0, 4096, %s21, [#allocation6], 512, 512, 32
    $region5: #{tpu_custom_call.1} parent=1 // pred_fallthru
      _
    // Predicated region
    $region6: #{tpu_custom_call.1} parent=1 // pred_check
      _
    $region7: #{tpu_custom_call.1} parent=1 // pred_check_branch
      %28 = sbr.rel (0) target = $region9
    $region8: #{tpu_custom_call.1} parent=1 // pred_region
      %29 = dma.done [#allocation6], 4096
    $region9: #{tpu_custom_call.1} parent=1 // pred_fallthru
      _
    %p30 = scmp.eq.s32.totalorder 0, 0
    // Predicated region
    $region10: #{tpu_custom_call.1} parent=1 // pred_check
      %p31 = pneg %p30
    $region11: #{tpu_custom_call.1} parent=1 // pred_check_branch
      %33 = sbr.rel (%p31) target = $region13
    $region12: #{tpu_custom_call.1} parent=1 // pred_region
      $region14: #{tpu_custom_call.1} parent=12
        #allocation12 [shape = 's32[1]{0}', space=sflag, size = 0x4, scoped, tag = 'scoped memory for tpu_custom_call.1']
        // Predicated region
        $region15: #{tpu_custom_call.1} parent=14 // pred_check
          _
        $region16: #{tpu_custom_call.1} parent=14 // pred_check_branch
          %35 = sbr.rel target = $region18
        $region17: #{tpu_custom_call.1} parent=14 // pred_region
          %36 = sst [smem:[#allocation15]] [#allocation14]
          %37 = sst [smem:[#allocation16]] [#allocation13]
        $region18: #{tpu_custom_call.1} parent=14 // pred_fallthru
          _
        %39 = shalt.err (0)
        %s41 = sshll.u32 [#allocation2], 4
        %s42 = int_to_ptr.vmem [resolvable:$true] %s41
        %44 = dma.hbm_to_vmem [thread:$0]  %s1, 8192, %s42, [#allocation12]
        %s45 = smul.u32 8, 16
        %s46 = smul.u32 %s45, 4
        %s47 = sshll.u32 %s46, 4
        %48 = dma.done [#allocation12], %s47
      %s49 = smul.u32 0, 8
      $region19: #{tpu_custom_call.1} parent=12
        #allocation17 [shape = 's32[1]{0}', space=sflag, size = 0x4, scoped, tag = 'scoped memory for tpu_custom_call.1']
        %s50 = smul.addr %s49, 16
        %s51 = scalar_lea.hbm %s2, %s50
        // Predicated region
        $region20: #{tpu_custom_call.1} parent=19 // pred_check
          _
        $region21: #{tpu_custom_call.1} parent=19 // pred_check_branch
          %53 = sbr.rel target = $region23
        $region22: #{tpu_custom_call.1} parent=19 // pred_region
          %54 = sst [smem:[#allocation15]] [#allocation19]
          %55 = sst [smem:[#allocation16]] [#allocation18]
        $region23: #{tpu_custom_call.1} parent=19 // pred_fallthru
          _
        %57 = shalt.err (0)
        %s59 = sshll.u32 [#allocation3], 4
        %s60 = int_to_ptr.vmem [resolvable:$true] %s59
        %62 = dma.hbm_to_vmem [thread:$0]  %s51, 128, %s60, [#allocation17]
        %s63 = smul.u32 8, 1
        %s64 = sshll.u32 %s63, 4
        %65 = dma.done [#allocation17], %s64
      $region24: #{tpu_custom_call.1} parent=12
        #allocation20 [shape = 's32[1]{0}', space=sflag, size = 0x4, scoped, tag = 'scoped memory for tpu_custom_call.1']
        %s66 = scalar_lea.vmem %s3, %s49
        %p68 = scmp.lt.u32.totalorder 8, 8
        %p69 = pneg %p68
        // Predicated region
        $region25: #{tpu_custom_call.1} parent=24 // pred_check
          _
        $region26: #{tpu_custom_call.1} parent=24 // pred_check_branch
          %71 = sbr.rel (%p68) target = $region28
        $region27: #{tpu_custom_call.1} parent=24 // pred_region
          %s86 = sand.u32 8, 7
          %p87 = scmp.eq.s32.totalorder %s86, 0
          // Predicated region
          $region40: #{tpu_custom_call.1} parent=27 // pred_check
            %p88 = pneg %p87
          $region41: #{tpu_custom_call.1} parent=27 // pred_check_branch
            %90 = sbr.rel (%p88) target = $region43
          $region42: #{tpu_custom_call.1} parent=27 // pred_region
            loop: start=0, step=1, limit=1
            $region44: #{tpu_custom_call.1} parent=42 // loop_pre_header
              _
            $region45: #{tpu_custom_call.1} parent=42 // loop_header
              %s92 = sphi 0, %s96
              %p93 = scmp.ge.s32.totalorder %s92, 1
              %s97 = sphi %s66, %s66
              %s98 = sphi [#allocation4], [#allocation4]
            $region46: #{tpu_custom_call.1} parent=42 // loop_header_branch
              %95 = sbr.rel (%p93) target = $region50
            $region47: #{tpu_custom_call.1} parent=42 // loop_body
              %v99 = vld [vmem:[%s97] sm:$0xff]
              %100 = vst [vmem:[%s98] sm:$0xff] %v99
            $region48: #{tpu_custom_call.1} parent=42 // loop_footer
              %s96 = sadd.s32 1, %s92
            $region49: #{tpu_custom_call.1} parent=42 // loop_footer_branch
              %91 = sbr.rel target = $region45
            $region50: #{tpu_custom_call.1} parent=42 // loop_exit
              _
          $region43: #{tpu_custom_call.1} parent=27 // pred_fallthru
            _
          %p101 = pneg %p87
          // Predicated region
          $region51: #{tpu_custom_call.1} parent=27 // pred_check
            _
          $region52: #{tpu_custom_call.1} parent=27 // pred_check_branch
            %103 = sbr.rel (%p87) target = $region54
          $region53: #{tpu_custom_call.1} parent=27 // pred_region
            %s104 = sand.u32 8, 7
          $region54: #{tpu_custom_call.1} parent=27 // pred_fallthru
            _
        $region28: #{tpu_custom_call.1} parent=24 // pred_fallthru
          _
        // Predicated region
        $region29: #{tpu_custom_call.1} parent=24 // pred_check
          %p72 = pneg %p68
        $region30: #{tpu_custom_call.1} parent=24 // pred_check_branch
          %74 = sbr.rel (%p72) target = $region32
        $region31: #{tpu_custom_call.1} parent=24 // pred_region
          %s75 = sshllo.u32 0, 8
          loop: start=0, step=1, limit=1
          $region33: #{tpu_custom_call.1} parent=31 // loop_pre_header
            _
          $region34: #{tpu_custom_call.1} parent=31 // loop_header
            %s77 = sphi 0, %s81
            %p78 = scmp.ge.s32.totalorder %s77, 1
            %s82 = sphi %s66, %s66
            %s83 = sphi [#allocation4], [#allocation4]
          $region35: #{tpu_custom_call.1} parent=31 // loop_header_branch
            %80 = sbr.rel (%p78) target = $region39
          $region36: #{tpu_custom_call.1} parent=31 // loop_body
            %v84 = vld [vmem:[%s82] sm:%s75]
            %85 = vst [vmem:[%s83] sm:%s75] %v84
          $region37: #{tpu_custom_call.1} parent=31 // loop_footer
            %s81 = sadd.s32 1, %s77
          $region38: #{tpu_custom_call.1} parent=31 // loop_footer_branch
            %76 = sbr.rel target = $region34
          $region39: #{tpu_custom_call.1} parent=31 // loop_exit
            _
        $region32: #{tpu_custom_call.1} parent=24 // pred_fallthru
          _
        // Predicated region
        $region55: #{tpu_custom_call.1} parent=24 // pred_check
          _
        $region56: #{tpu_custom_call.1} parent=24 // pred_check_branch
          %107 = sbr.rel (0) target = $region58
        $region57: #{tpu_custom_call.1} parent=24 // pred_region
          %108 = vsyncadd [#allocation20], 128
        $region58: #{tpu_custom_call.1} parent=24 // pred_fallthru
          _
        %s109 = smul.u32 8, 1
        %s110 = sshll.u32 %s109, 4
        %111 = dma.done [#allocation20], %s110
    $region13: #{tpu_custom_call.1} parent=1 // pred_fallthru
      _
    %v112 = vld [vmem:[#allocation2] sm:$0xff]
    %v113 = vld [vmem:[#allocation2 + $0x8] sm:$0xff]
    %v114 = vld [vmem:[#allocation2 + $0x10] sm:$0xff]
    %v115 = vld [vmem:[#allocation2 + $0x18] sm:$0xff]
    %v116 = vld [vmem:[#allocation2 + $0x20] sm:$0xff]
    %v117 = vld [vmem:[#allocation2 + $0x28] sm:$0xff]
    %v118 = vld [vmem:[#allocation2 + $0x30] sm:$0xff]
    %v119 = vld [vmem:[#allocation2 + $0x38] sm:$0xff]
    %v120 = vld [vmem:[#allocation2 + $0x40] sm:$0xff]
    %v121 = vld [vmem:[#allocation2 + $0x48] sm:$0xff]
    %v122 = vld [vmem:[#allocation2 + $0x50] sm:$0xff]
    %v123 = vld [vmem:[#allocation2 + $0x58] sm:$0xff]
    %v124 = vld [vmem:[#allocation2 + $0x60] sm:$0xff]
    %v125 = vld [vmem:[#allocation2 + $0x68] sm:$0xff]
    %v126 = vld [vmem:[#allocation2 + $0x70] sm:$0xff]
    %v127 = vld [vmem:[#allocation2 + $0x78] sm:$0xff]
    %v128 = vld [vmem:[#allocation2 + $0x80] sm:$0xff]
    %v129 = vld [vmem:[#allocation2 + $0x88] sm:$0xff]
    %v130 = vld [vmem:[#allocation2 + $0x90] sm:$0xff]
    %v131 = vld [vmem:[#allocation2 + $0x98] sm:$0xff]
    %v132 = vld [vmem:[#allocation2 + $0xa0] sm:$0xff]
    %v133 = vld [vmem:[#allocation2 + $0xa8] sm:$0xff]
    %v134 = vld [vmem:[#allocation2 + $0xb0] sm:$0xff]
    %v135 = vld [vmem:[#allocation2 + $0xb8] sm:$0xff]
    %v136 = vld [vmem:[#allocation2 + $0xc0] sm:$0xff]
    %v137 = vld [vmem:[#allocation2 + $0xc8] sm:$0xff]
    %v138 = vld [vmem:[#allocation2 + $0xd0] sm:$0xff]
    %v139 = vld [vmem:[#allocation2 + $0xd8] sm:$0xff]
    %v140 = vld [vmem:[#allocation2 + $0xe0] sm:$0xff]
    %v141 = vld [vmem:[#allocation2 + $0xe8] sm:$0xff]
    %v142 = vld [vmem:[#allocation2 + $0xf0] sm:$0xff]
    %v143 = vld [vmem:[#allocation2 + $0xf8] sm:$0xff]
    %v144 = vld [vmem:[#allocation2 + $0x100] sm:$0xff]
    %v145 = vld [vmem:[#allocation2 + $0x108] sm:$0xff]
    %v146 = vld [vmem:[#allocation2 + $0x110] sm:$0xff]
    %v147 = vld [vmem:[#allocation2 + $0x118] sm:$0xff]
    %v148 = vld [vmem:[#allocation2 + $0x120] sm:$0xff]
    %v149 = vld [vmem:[#allocation2 + $0x128] sm:$0xff]
    %v150 = vld [vmem:[#allocation2 + $0x130] sm:$0xff]
    %v151 = vld [vmem:[#allocation2 + $0x138] sm:$0xff]
    %v152 = vld [vmem:[#allocation2 + $0x140] sm:$0xff]
    %v153 = vld [vmem:[#allocation2 + $0x148] sm:$0xff]
    %v154 = vld [vmem:[#allocation2 + $0x150] sm:$0xff]
    %v155 = vld [vmem:[#allocation2 + $0x158] sm:$0xff]
    %v156 = vld [vmem:[#allocation2 + $0x160] sm:$0xff]
    %v157 = vld [vmem:[#allocation2 + $0x168] sm:$0xff]
    %v158 = vld [vmem:[#allocation2 + $0x170] sm:$0xff]
    %v159 = vld [vmem:[#allocation2 + $0x178] sm:$0xff]
    %v160 = vld [vmem:[#allocation2 + $0x180] sm:$0xff]
    %v161 = vld [vmem:[#allocation2 + $0x188] sm:$0xff]
    %v162 = vld [vmem:[#allocation2 + $0x190] sm:$0xff]
    %v163 = vld [vmem:[#allocation2 + $0x198] sm:$0xff]
    %v164 = vld [vmem:[#allocation2 + $0x1a0] sm:$0xff]
    %v165 = vld [vmem:[#allocation2 + $0x1a8] sm:$0xff]
    %v166 = vld [vmem:[#allocation2 + $0x1b0] sm:$0xff]
    %v167 = vld [vmem:[#allocation2 + $0x1b8] sm:$0xff]
    %v168 = vld [vmem:[#allocation2 + $0x1c0] sm:$0xff]
    %v169 = vld [vmem:[#allocation2 + $0x1c8] sm:$0xff]
    %v170 = vld [vmem:[#allocation2 + $0x1d0] sm:$0xff]
    %v171 = vld [vmem:[#allocation2 + $0x1d8] sm:$0xff]
    %v172 = vld [vmem:[#allocation2 + $0x1e0] sm:$0xff]
    %v173 = vld [vmem:[#allocation2 + $0x1e8] sm:$0xff]
    %v174 = vld [vmem:[#allocation2 + $0x1f0] sm:$0xff]
    %v175 = vld [vmem:[#allocation2 + $0x1f8] sm:$0xff]
    %s176 = smul.u32 0, 8
    %v177 = vld [vmem:[#allocation3] sm:$0xff]
    %v178 = vld [vmem:[#allocation4] sm:$0xff]
    %v179 = vld [vmem:[#allocation5] sm:$0xff]
    %v180 = vld [vmem:[#allocation5 + $0x8] sm:$0xff]
    %v181 = vld [vmem:[#allocation5 + $0x10] sm:$0xff]
    %v182 = vld [vmem:[#allocation5 + $0x18] sm:$0xff]
    %183 = vmatprep.subr.mxu0 %v113
    %184 = vmatpush1.msra.mxu0 %v112
    %185 = vmatprep.subr.mxu0 %v117
    %186 = vmatpush1.msra.mxu0 %v116
    %187 = vmatprep.subr.mxu0 %v121
    %188 = vmatpush1.msra.mxu0 %v120
    %189 = vmatprep.subr.mxu0 %v125
    %190 = vmatpush1.msra.mxu0 %v124
    %191 = vmatprep.subr.mxu0 %v129
    %192 = vmatpush1.msra.mxu0 %v128
    %193 = vmatprep.subr.mxu0 %v133
    %194 = vmatpush1.msra.mxu0 %v132
    %195 = vmatprep.subr.mxu0 %v137
    %196 = vmatpush1.msra.mxu0 %v136
    %197 = vmatprep.subr.mxu0 %v141
    %198 = vmatpush1.msra.mxu0 %v140
    %199 = vmatprep.subr.mxu0 %v145
    %200 = vmatpush1.msra.mxu0 %v144
    %201 = vmatprep.subr.mxu0 %v149
    %202 = vmatpush1.msra.mxu0 %v148
    %203 = vmatprep.subr.mxu0 %v153
    %204 = vmatpush1.msra.mxu0 %v152
    %205 = vmatprep.subr.mxu0 %v157
    %206 = vmatpush1.msra.mxu0 %v156
    %207 = vmatprep.subr.mxu0 %v161
    %208 = vmatpush1.msra.mxu0 %v160
    %209 = vmatprep.subr.mxu0 %v165
    %210 = vmatpush1.msra.mxu0 %v164
    %211 = vmatprep.subr.mxu0 %v169
    %212 = vmatpush1.msra.mxu0 %v168
    %213 = vmatprep.subr.mxu0 %v173
    %214 = vmatpush1.msra.mxu0 %v172
    %215 = vmatprep.subr.mxu0 0.0
    %216 = vmatpush1.msra.mxu0 0.0
    %217 = vmatprep.subr.mxu0 0.0
    %218 = vmatpush1.msra.mxu0 0.0
    %219 = vmatprep.subr.mxu0 0.0
    %220 = vmatpush1.msra.mxu0 0.0
    %221 = vmatprep.subr.mxu0 0.0
    %222 = vmatpush1.msra.mxu0 0.0
    %223 = vmatprep.subr.mxu0 0.0
    %224 = vmatpush1.msra.mxu0 0.0
    %225 = vmatprep.subr.mxu0 0.0
    %226 = vmatpush1.msra.mxu0 0.0
    %227 = vmatprep.subr.mxu0 0.0
    %228 = vmatpush1.msra.mxu0 0.0
    %229 = vmatprep.subr.mxu0 0.0
    %230 = vmatpush1.msra.mxu0 0.0
    %231 = vmatprep.subr.mxu0 0.0
    %232 = vmatpush1.msra.mxu0 0.0
    %233 = vmatprep.subr.mxu0 0.0
    %234 = vmatpush1.msra.mxu0 0.0
    %235 = vmatprep.subr.mxu0 0.0
    %236 = vmatpush1.msra.mxu0 0.0
    %237 = vmatprep.subr.mxu0 0.0
    %238 = vmatpush1.msra.mxu0 0.0
    %239 = vmatprep.subr.mxu0 0.0
    %240 = vmatpush1.msra.mxu0 0.0
    %241 = vmatprep.subr.mxu0 0.0
    %242 = vmatpush1.msra.mxu0 0.0
    %243 = vmatprep.subr.mxu0 0.0
    %244 = vmatpush1.msra.mxu0 0.0
    %245 = vmatprep.subr.mxu0 0.0
    %246 = vmatpush1.msra.mxu0 0.0
    %247 = vmatprep.mubr.f32.mxu0 0.0
    %248 = vmatmul.mubr.f32.gmra.mrb[0].mxu0 %v177
    %v249 = vpop.f32.mrb[0].mxu0
    %v250 = vadd.f32 0.0, %v249
    %v251 = vpop.f32.mrb[0].mxu0
    %v252 = vadd.f32 0.0, %v251
    %253 = vdwg.mxu0
    %254 = vmatprep.subr.mxu0 %v115
    %255 = vmatpush1.msra.mxu0 %v114
    %256 = vmatprep.subr.mxu0 %v119
    %257 = vmatpush1.msra.mxu0 %v118
    %258 = vmatprep.subr.mxu0 %v123
    %259 = vmatpush1.msra.mxu0 %v122
    %260 = vmatprep.subr.mxu0 %v127
    %261 = vmatpush1.msra.mxu0 %v126
    %262 = vmatprep.subr.mxu0 %v131
    %263 = vmatpush1.msra.mxu0 %v130
    %264 = vmatprep.subr.mxu0 %v135
    %265 = vmatpush1.msra.mxu0 %v134
    %266 = vmatprep.subr.mxu0 %v139
    %267 = vmatpush1.msra.mxu0 %v138
    %268 = vmatprep.subr.mxu0 %v143
    %269 = vmatpush1.msra.mxu0 %v142
    %270 = vmatprep.subr.mxu0 %v147
    %271 = vmatpush1.msra.mxu0 %v146
    %272 = vmatprep.subr.mxu0 %v151
    %273 = vmatpush1.msra.mxu0 %v150
    %274 = vmatprep.subr.mxu0 %v155
    %275 = vmatpush1.msra.mxu0 %v154
    %276 = vmatprep.subr.mxu0 %v159
    %277 = vmatpush1.msra.mxu0 %v158
    %278 = vmatprep.subr.mxu0 %v163
    %279 = vmatpush1.msra.mxu0 %v162
    %280 = vmatprep.subr.mxu0 %v167
    %281 = vmatpush1.msra.mxu0 %v166
    %282 = vmatprep.subr.mxu0 %v171
    %283 = vmatpush1.msra.mxu0 %v170
    %284 = vmatprep.subr.mxu0 %v175
    %285 = vmatpush1.msra.mxu0 %v174
    %286 = vmatprep.subr.mxu0 0.0
    %287 = vmatpush1.msra.mxu0 0.0
    %288 = vmatprep.subr.mxu0 0.0
    %289 = vmatpush1.msra.mxu0 0.0
    %290 = vmatprep.subr.mxu0 0.0
    %291 = vmatpush1.msra.mxu0 0.0
    %292 = vmatprep.subr.mxu0 0.0
    %293 = vmatpush1.msra.mxu0 0.0
    %294 = vmatprep.subr.mxu0 0.0
    %295 = vmatpush1.msra.mxu0 0.0
    %296 = vmatprep.subr.mxu0 0.0
    %297 = vmatpush1.msra.mxu0 0.0
    %298 = vmatprep.subr.mxu0 0.0
    %299 = vmatpush1.msra.mxu0 0.0
    %300 = vmatprep.subr.mxu0 0.0
    %301 = vmatpush1.msra.mxu0 0.0
    %302 = vmatprep.subr.mxu0 0.0
    %303 = vmatpush1.msra.mxu0 0.0
    %304 = vmatprep.subr.mxu0 0.0
    %305 = vmatpush1.msra.mxu0 0.0
    %306 = vmatprep.subr.mxu0 0.0
    %307 = vmatpush1.msra.mxu0 0.0
    %308 = vmatprep.subr.mxu0 0.0
    %309 = vmatpush1.msra.mxu0 0.0
    %310 = vmatprep.subr.mxu0 0.0
    %311 = vmatpush1.msra.mxu0 0.0
    %312 = vmatprep.subr.mxu0 0.0
    %313 = vmatpush1.msra.mxu0 0.0
    %314 = vmatprep.subr.mxu0 0.0
    %315 = vmatpush1.msra.mxu0 0.0
    %316 = vmatprep.subr.mxu0 0.0
    %317 = vmatpush1.msra.mxu0 0.0
    %318 = vmatprep.mubr.f32.mxu0 0.0
    %319 = vmatmul.mubr.f32.gmra.mrb[0].mxu0 %v177
    %v320 = vpop.f32.mrb[0].mxu0
    %v321 = vadd.f32 0.0, %v320
    %v322 = vpop.f32.mrb[0].mxu0
    %v323 = vadd.f32 0.0, %v322
    %324 = vdwg.mxu0
    %v325 = vadd.f32 %v179, %v250
    %v326 = vadd.f32 %v180, %v252
    %v327 = vadd.f32 %v181, %v321
    %v328 = vadd.f32 %v182, %v323
    %v329 = vxor.u32 %v325, 2147483648
    %v330 = vxor.u32 %v326, 2147483648
    %v331 = vxor.u32 %v327, 2147483648
    %v332 = vmul.f32 %v329, 1.442695
    %v333 = vpow.pop %v332
    %v334 = vmul.f32 %v330, 1.442695
    %v335 = vpow.pop %v334
    %v336 = vmul.f32 %v331, 1.442695
    %v337 = vpow.pop %v336
    %v338 = vadd.f32 %v333, 1.0
    %v339 = vadd.f32 %v335, 1.0
    %v340 = vadd.f32 %v337, 1.0
    %v341 = vrcp.pop %v338
    %v342 = vmul.f32 1.0, %v341
    %v343 = vrcp.pop %v339
    %v344 = vmul.f32 1.0, %v343
    %v345 = vrcp.pop %v340
    %v346 = vmul.f32 1.0, %v345
    %v347 = vtanh.pop %v328
    %v348 = vmul.f32 %v342, %v178
    %v349 = vmul.f32 %v344, %v347
    %v350 = vadd.f32 %v348, %v349
    %v351 = vtanh.pop %v350
    %v352 = vmul.f32 %v346, %v351
    %353 = vst [vmem:[#allocation8] sm:$0xff] %v352
    %p354 = scmp.eq.s32.totalorder %s176, 7
    // Predicated region
    $region59: #{tpu_custom_call.1} parent=1 // pred_check
      %p355 = pneg %p354
    $region60: #{tpu_custom_call.1} parent=1 // pred_check_branch
      %357 = sbr.rel (%p355) target = $region62
    $region61: #{tpu_custom_call.1} parent=1 // pred_region
      %358 = vst [vmem:[#allocation9] sm:$0xff] %v352
      %359 = vst [vmem:[#allocation11] sm:$0xff] %v350
    $region62: #{tpu_custom_call.1} parent=1 // pred_fallthru
      _
    %s360 = scalar_lea.vmem [#allocation5], 32
    %v361 = vld [vmem:[%s360] sm:$0xff]
    %v362 = vld [vmem:[%s360 + $0x8] sm:$0xff]
    %v363 = vld [vmem:[%s360 + $0x10] sm:$0xff]
    %v364 = vld [vmem:[%s360 + $0x18] sm:$0xff]
    %365 = vmatprep.subr.mxu0 %v113
    %366 = vmatpush1.msra.mxu0 %v112
    %367 = vmatprep.subr.mxu0 %v117
    %368 = vmatpush1.msra.mxu0 %v116
    %369 = vmatprep.subr.mxu0 %v121
    %370 = vmatpush1.msra.mxu0 %v120
    %371 = vmatprep.subr.mxu0 %v125
    %372 = vmatpush1.msra.mxu0 %v124
    %373 = vmatprep.subr.mxu0 %v129
    %374 = vmatpush1.msra.mxu0 %v128
    %375 = vmatprep.subr.mxu0 %v133
    %376 = vmatpush1.msra.mxu0 %v132
    %377 = vmatprep.subr.mxu0 %v137
    %378 = vmatpush1.msra.mxu0 %v136
    %379 = vmatprep.subr.mxu0 %v141
    %380 = vmatpush1.msra.mxu0 %v140
    %381 = vmatprep.subr.mxu0 %v145
    %382 = vmatpush1.msra.mxu0 %v144
    %383 = vmatprep.subr.mxu0 %v149
    %384 = vmatpush1.msra.mxu0 %v148
    %385 = vmatprep.subr.mxu0 %v153
    %386 = vmatpush1.msra.mxu0 %v152
    %387 = vmatprep.subr.mxu0 %v157
    %388 = vmatpush1.msra.mxu0 %v156
    %389 = vmatprep.subr.mxu0 %v161
    %390 = vmatpush1.msra.mxu0 %v160
    %391 = vmatprep.subr.mxu0 %v165
    %392 = vmatpush1.msra.mxu0 %v164
    %393 = vmatprep.subr.mxu0 %v169
    %394 = vmatpush1.msra.mxu0 %v168
    %395 = vmatprep.subr.mxu0 %v173
    %396 = vmatpush1.msra.mxu0 %v172
    %397 = vmatprep.subr.mxu0 0.0
    %398 = vmatpush1.msra.mxu0 0.0
    %399 = vmatprep.subr.mxu0 0.0
    %400 = vmatpush1.msra.mxu0 0.0
    %401 = vmatprep.subr.mxu0 0.0
    %402 = vmatpush1.msra.mxu0 0.0
    %403 = vmatprep.subr.mxu0 0.0
    %404 = vmatpush1.msra.mxu0 0.0
    %405 = vmatprep.subr.mxu0 0.0
    %406 = vmatpush1.msra.mxu0 0.0
    %407 = vmatprep.subr.mxu0 0.0
    %408 = vmatpush1.msra.mxu0 0.0
    %409 = vmatprep.subr.mxu0 0.0
    %410 = vmatpush1.msra.mxu0 0.0
    %411 = vmatprep.subr.mxu0 0.0
    %412 = vmatpush1.msra.mxu0 0.0
    %413 = vmatprep.subr.mxu0 0.0
    %414 = vmatpush1.msra.mxu0 0.0
    %415 = vmatprep.subr.mxu0 0.0
    %416 = vmatpush1.msra.mxu0 0.0
    %417 = vmatprep.subr.mxu0 0.0
    %418 = vmatpush1.msra.mxu0 0.0
    %419 = vmatprep.subr.mxu0 0.0
    %420 = vmatpush1.msra.mxu0 0.0
    %421 = vmatprep.subr.mxu0 0.0
    %422 = vmatpush1.msra.mxu0 0.0
    %423 = vmatprep.subr.mxu0 0.0
    %424 = vmatpush1.msra.mxu0 0.0
    %425 = vmatprep.subr.mxu0 0.0
    %426 = vmatpush1.msra.mxu0 0.0
    %427 = vmatprep.subr.mxu0 0.0
    %428 = vmatpush1.msra.mxu0 0.0
    %429 = vmatprep.mubr.f32.mxu0 0.0
    %430 = vmatmul.mubr.f32.gmra.mrb[0].mxu0 %v352
    %v431 = vpop.f32.mrb[0].mxu0
    %v432 = vadd.f32 0.0, %v431
    %v433 = vpop.f32.mrb[0].mxu0
    %v434 = vadd.f32 0.0, %v433
    %435 = vdwg.mxu0
    %436 = vmatprep.subr.mxu0 %v115
    %437 = vmatpush1.msra.mxu0 %v114
    %438 = vmatprep.subr.mxu0 %v119
    %439 = vmatpush1.msra.mxu0 %v118
    %440 = vmatprep.subr.mxu0 %v123
    %441 = vmatpush1.msra.mxu0 %v122
    %442 = vmatprep.subr.mxu0 %v127
    %443 = vmatpush1.msra.mxu0 %v126
    %444 = vmatprep.subr.mxu0 %v131
    %445 = vmatpush1.msra.mxu0 %v130
    %446 = vmatprep.subr.mxu0 %v135
    %447 = vmatpush1.msra.mxu0 %v134
    %448 = vmatprep.subr.mxu0 %v139
    %449 = vmatpush1.msra.mxu0 %v138
    %450 = vmatprep.subr.mxu0 %v143
    %451 = vmatpush1.msra.mxu0 %v142
    %452 = vmatprep.subr.mxu0 %v147
    %453 = vmatpush1.msra.mxu0 %v146
    %454 = vmatprep.subr.mxu0 %v151
    %455 = vmatpush1.msra.mxu0 %v150
    %456 = vmatprep.subr.mxu0 %v155
    %457 = vmatpush1.msra.mxu0 %v154
    %458 = vmatprep.subr.mxu0 %v159
    %459 = vmatpush1.msra.mxu0 %v158
    %460 = vmatprep.subr.mxu0 %v163
    %461 = vmatpush1.msra.mxu0 %v162
    %462 = vmatprep.subr.mxu0 %v167
    %463 = vmatpush1.msra.mxu0 %v166
    %464 = vmatprep.subr.mxu0 %v171
    %465 = vmatpush1.msra.mxu0 %v170
    %466 = vmatprep.subr.mxu0 %v175
    %467 = vmatpush1.msra.mxu0 %v174
    %468 = vmatprep.subr.mxu0 0.0
    %469 = vmatpush1.msra.mxu0 0.0
    %470 = vmatprep.subr.mxu0 0.0
    %471 = vmatpush1.msra.mxu0 0.0
    %472 = vmatprep.subr.mxu0 0.0
    %473 = vmatpush1.msra.mxu0 0.0
    %474 = vmatprep.subr.mxu0 0.0
    %475 = vmatpush1.msra.mxu0 0.0
    %476 = vmatprep.subr.mxu0 0.0
    %477 = vmatpush1.msra.mxu0 0.0
    %478 = vmatprep.subr.mxu0 0.0
    %479 = vmatpush1.msra.mxu0 0.0
    %480 = vmatprep.subr.mxu0 0.0
    %481 = vmatpush1.msra.mxu0 0.0
    %482 = vmatprep.subr.mxu0 0.0
    %483 = vmatpush1.msra.mxu0 0.0
    %484 = vmatprep.subr.mxu0 0.0
    %485 = vmatpush1.msra.mxu0 0.0
    %486 = vmatprep.subr.mxu0 0.0
    %487 = vmatpush1.msra.mxu0 0.0
    %488 = vmatprep.subr.mxu0 0.0
    %489 = vmatpush1.msra.mxu0 0.0
    %490 = vmatprep.subr.mxu0 0.0
    %491 = vmatpush1.msra.mxu0 0.0
    %492 = vmatprep.subr.mxu0 0.0
    %493 = vmatpush1.msra.mxu0 0.0
    %494 = vmatprep.subr.mxu0 0.0
    %495 = vmatpush1.msra.mxu0 0.0
    %496 = vmatprep.subr.mxu0 0.0
    %497 = vmatpush1.msra.mxu0 0.0
    %498 = vmatprep.subr.mxu0 0.0
    %499 = vmatpush1.msra.mxu0 0.0
    %500 = vmatprep.mubr.f32.mxu0 0.0
    %501 = vmatmul.mubr.f32.gmra.mrb[0].mxu0 %v352
    %v502 = vpop.f32.mrb[0].mxu0
    %v503 = vadd.f32 0.0, %v502
    %v504 = vpop.f32.mrb[0].mxu0
    %v505 = vadd.f32 0.0, %v504
    %506 = vdwg.mxu0
    %v507 = vadd.f32 %v361, %v432
    %v508 = vadd.f32 %v362, %v434
    %v509 = vadd.f32 %v363, %v503
    %v510 = vadd.f32 %v364, %v505
    %v511 = vxor.u32 %v507, 2147483648
    %v512 = vxor.u32 %v508, 2147483648
    %v513 = vxor.u32 %v509, 2147483648
    %v514 = vmul.f32 %v511, 1.442695
    %v515 = vpow.pop %v514
    %v516 = vmul.f32 %v512, 1.442695
    %v517 = vpow.pop %v516
    %v518 = vmul.f32 %v513, 1.442695
    %v519 = vpow.pop %v518
    %v520 = vadd.f32 %v515, 1.0
    %v521 = vadd.f32 %v517, 1.0
    %v522 = vadd.f32 %v519, 1.0
    %v523 = vrcp.pop %v520
    %v524 = vmul.f32 1.0, %v523
    %v525 = vrcp.pop %v521
    %v526 = vmul.f32 1.0, %v525
    %v527 = vrcp.pop %v522
    %v528 = vmul.f32 1.0, %v527
    %v529 = vtanh.pop %v510
    %v530 = vmul.f32 %v524, %v350
    %v531 = vmul.f32 %v526, %v529
    %v532 = vadd.f32 %v530, %v531
    %v533 = vtanh.pop %v532
    %v534 = vmul.f32 %v528, %v533
    %s535 = scalar_lea.vmem [#allocation8], 8
    %536 = vst [vmem:[%s535] sm:$0xff] %v534
    %s537 = sadd.s32 %s176, 1
    %p538 = scmp.eq.s32.totalorder %s537, 7
    // Predicated region
    $region63: #{tpu_custom_call.1} parent=1 // pred_check
      %p539 = pneg %p538
    $region64: #{tpu_custom_call.1} parent=1 // pred_check_branch
      %541 = sbr.rel (%p539) target = $region66
    $region65: #{tpu_custom_call.1} parent=1 // pred_region
      %542 = vst [vmem:[#allocation9] sm:$0xff] %v534
      %543 = vst [vmem:[#allocation11] sm:$0xff] %v532
    $region66: #{tpu_custom_call.1} parent=1 // pred_fallthru
      _
    %s544 = scalar_lea.vmem [#allocation5], 64
    %v545 = vld [vmem:[%s544] sm:$0xff]
    %v546 = vld [vmem:[%s544 + $0x8] sm:$0xff]
    %v547 = vld [vmem:[%s544 + $0x10] sm:$0xff]
    %v548 = vld [vmem:[%s544 + $0x18] sm:$0xff]
    %549 = vmatprep.subr.mxu0 %v113
    %550 = vmatpush1.msra.mxu0 %v112
    %551 = vmatprep.subr.mxu0 %v117
    %552 = vmatpush1.msra.mxu0 %v116
    %553 = vmatprep.subr.mxu0 %v121
    %554 = vmatpush1.msra.mxu0 %v120
    %555 = vmatprep.subr.mxu0 %v125
    %556 = vmatpush1.msra.mxu0 %v124
    %557 = vmatprep.subr.mxu0 %v129
    %558 = vmatpush1.msra.mxu0 %v128
    %559 = vmatprep.subr.mxu0 %v133
    %560 = vmatpush1.msra.mxu0 %v132
    %561 = vmatprep.subr.mxu0 %v137
    %562 = vmatpush1.msra.mxu0 %v136
    %563 = vmatprep.subr.mxu0 %v141
    %564 = vmatpush1.msra.mxu0 %v140
    %565 = vmatprep.subr.mxu0 %v145
    %566 = vmatpush1.msra.mxu0 %v144
    %567 = vmatprep.subr.mxu0 %v149
    %568 = vmatpush1.msra.mxu0 %v148
    %569 = vmatprep.subr.mxu0 %v153
    %570 = vmatpush1.msra.mxu0 %v152
    %571 = vmatprep.subr.mxu0 %v157
    %572 = vmatpush1.msra.mxu0 %v156
    %573 = vmatprep.subr.mxu0 %v161
    %574 = vmatpush1.msra.mxu0 %v160
    %575 = vmatprep.subr.mxu0 %v165
    %576 = vmatpush1.msra.mxu0 %v164
    %577 = vmatprep.subr.mxu0 %v169
    %578 = vmatpush1.msra.mxu0 %v168
    %579 = vmatprep.subr.mxu0 %v173
    %580 = vmatpush1.msra.mxu0 %v172
    %581 = vmatprep.subr.mxu0 0.0
    %582 = vmatpush1.msra.mxu0 0.0
    %583 = vmatprep.subr.mxu0 0.0
    %584 = vmatpush1.msra.mxu0 0.0
    %585 = vmatprep.subr.mxu0 0.0
    %586 = vmatpush1.msra.mxu0 0.0
    %587 = vmatprep.subr.mxu0 0.0
    %588 = vmatpush1.msra.mxu0 0.0
    %589 = vmatprep.subr.mxu0 0.0
    %590 = vmatpush1.msra.mxu0 0.0
    %591 = vmatprep.subr.mxu0 0.0
    %592 = vmatpush1.msra.mxu0 0.0
    %593 = vmatprep.subr.mxu0 0.0
    %594 = vmatpush1.msra.mxu0 0.0
    %595 = vmatprep.subr.mxu0 0.0
    %596 = vmatpush1.msra.mxu0 0.0
    %597 = vmatprep.subr.mxu0 0.0
    %598 = vmatpush1.msra.mxu0 0.0
    %599 = vmatprep.subr.mxu0 0.0
    %600 = vmatpush1.msra.mxu0 0.0
    %601 = vmatprep.subr.mxu0 0.0
    %602 = vmatpush1.msra.mxu0 0.0
    %603 = vmatprep.subr.mxu0 0.0
    %604 = vmatpush1.msra.mxu0 0.0
    %605 = vmatprep.subr.mxu0 0.0
    %606 = vmatpush1.msra.mxu0 0.0
    %607 = vmatprep.subr.mxu0 0.0
    %608 = vmatpush1.msra.mxu0 0.0
    %609 = vmatprep.subr.mxu0 0.0
    %610 = vmatpush1.msra.mxu0 0.0
    %611 = vmatprep.subr.mxu0 0.0
    %612 = vmatpush1.msra.mxu0 0.0
    %613 = vmatprep.mubr.f32.mxu0 0.0
    %614 = vmatmul.mubr.f32.gmra.mrb[0].mxu0 %v534
    %v615 = vpop.f32.mrb[0].mxu0
    %v616 = vadd.f32 0.0, %v615
    %v617 = vpop.f32.mrb[0].mxu0
    %v618 = vadd.f32 0.0, %v617
    %619 = vdwg.mxu0
    %620 = vmatprep.subr.mxu0 %v115
    %621 = vmatpush1.msra.mxu0 %v114
    %622 = vmatprep.subr.mxu0 %v119
    %623 = vmatpush1.msra.mxu0 %v118
    %624 = vmatprep.subr.mxu0 %v123
    %625 = vmatpush1.msra.mxu0 %v122
    %626 = vmatprep.subr.mxu0 %v127
    %627 = vmatpush1.msra.mxu0 %v126
    %628 = vmatprep.subr.mxu0 %v131
    %629 = vmatpush1.msra.mxu0 %v130
    %630 = vmatprep.subr.mxu0 %v135
    %631 = vmatpush1.msra.mxu0 %v134
    %632 = vmatprep.subr.mxu0 %v139
    %633 = vmatpush1.msra.mxu0 %v138
    %634 = vmatprep.subr.mxu0 %v143
    %635 = vmatpush1.msra.mxu0 %v142
    %636 = vmatprep.subr.mxu0 %v147
    %637 = vmatpush1.msra.mxu0 %v146
    %638 = vmatprep.subr.mxu0 %v151
    %639 = vmatpush1.msra.mxu0 %v150
    %640 = vmatprep.subr.mxu0 %v155
    %641 = vmatpush1.msra.mxu0 %v154
    %642 = vmatprep.subr.mxu0 %v159
    %643 = vmatpush1.msra.mxu0 %v158
    %644 = vmatprep.subr.mxu0 %v163
    %645 = vmatpush1.msra.mxu0 %v162
    %646 = vmatprep.subr.mxu0 %v167
    %647 = vmatpush1.msra.mxu0 %v166
    %648 = vmatprep.subr.mxu0 %v171
    %649 = vmatpush1.msra.mxu0 %v170
    %650 = vmatprep.subr.mxu0 %v175
    %651 = vmatpush1.msra.mxu0 %v174
    %652 = vmatprep.subr.mxu0 0.0
    %653 = vmatpush1.msra.mxu0 0.0
    %654 = vmatprep.subr.mxu0 0.0
    %655 = vmatpush1.msra.mxu0 0.0
    %656 = vmatprep.subr.mxu0 0.0
    %657 = vmatpush1.msra.mxu0 0.0
    %658 = vmatprep.subr.mxu0 0.0
    %659 = vmatpush1.msra.mxu0 0.0
    %660 = vmatprep.subr.mxu0 0.0
    %661 = vmatpush1.msra.mxu0 0.0
    %662 = vmatprep.subr.mxu0 0.0
    %663 = vmatpush1.msra.mxu0 0.0
    %664 = vmatprep.subr.mxu0 0.0
    %665 = vmatpush1.msra.mxu0 0.0
    %666 = vmatprep.subr.mxu0 0.0
    %667 = vmatpush1.msra.mxu0 0.0
    %668 = vmatprep.subr.mxu0 0.0
    %669 = vmatpush1.msra.mxu0 0.0
    %670 = vmatprep.subr.mxu0 0.0
    %671 = vmatpush1.msra.mxu0 0.0
    %672 = vmatprep.subr.mxu0 0.0
    %673 = vmatpush1.msra.mxu0 0.0
    %674 = vmatprep.subr.mxu0 0.0
    %675 = vmatpush1.msra.mxu0 0.0
    %676 = vmatprep.subr.mxu0 0.0
    %677 = vmatpush1.msra.mxu0 0.0
    %678 = vmatprep.subr.mxu0 0.0
    %679 = vmatpush1.msra.mxu0 0.0
    %680 = vmatprep.subr.mxu0 0.0
    %681 = vmatpush1.msra.mxu0 0.0
    %682 = vmatprep.subr.mxu0 0.0
    %683 = vmatpush1.msra.mxu0 0.0
    %684 = vmatprep.mubr.f32.mxu0 0.0
    %685 = vmatmul.mubr.f32.gmra.mrb[0].mxu0 %v534
    %v686 = vpop.f32.mrb[0].mxu0
    %v687 = vadd.f32 0.0, %v686
    %v688 = vpop.f32.mrb[0].mxu0
    %v689 = vadd.f32 0.0, %v688
    %690 = vdwg.mxu0
    %v691 = vadd.f32 %v545, %v616
    %v692 = vadd.f32 %v546, %v618
    %v693 = vadd.f32 %v547, %v687
    %v694 = vadd.f32 %v548, %v689
    %v695 = vxor.u32 %v691, 2147483648
    %v696 = vxor.u32 %v692, 2147483648
    %v697 = vxor.u32 %v693, 2147483648
    %v698 = vmul.f32 %v695, 1.442695
    %v699 = vpow.pop %v698
    %v700 = vmul.f32 %v696, 1.442695
    %v701 = vpow.pop %v700
    %v702 = vmul.f32 %v697, 1.442695
    %v703 = vpow.pop %v702
    %v704 = vadd.f32 %v699, 1.0
    %v705 = vadd.f32 %v701, 1.0
    %v706 = vadd.f32 %v703, 1.0
    %v707 = vrcp.pop %v704
    %v708 = vmul.f32 1.0, %v707
    %v709 = vrcp.pop %v705
    %v710 = vmul.f32 1.0, %v709
    %v711 = vrcp.pop %v706
    %v712 = vmul.f32 1.0, %v711
    %v713 = vtanh.pop %v694
    %v714 = vmul.f32 %v708, %v532
    %v715 = vmul.f32 %v710, %v713
    %v716 = vadd.f32 %v714, %v715
    %v717 = vtanh.pop %v716
    %v718 = vmul.f32 %v712, %v717
    %s719 = scalar_lea.vmem [#allocation8], 16
    %720 = vst [vmem:[%s719] sm:$0xff] %v718
    %s721 = sadd.s32 %s176, 2
    %p722 = scmp.eq.s32.totalorder %s721, 7
    // Predicated region
    $region67: #{tpu_custom_call.1} parent=1 // pred_check
      %p723 = pneg %p722
    $region68: #{tpu_custom_call.1} parent=1 // pred_check_branch
      %725 = sbr.rel (%p723) target = $region70
    $region69: #{tpu_custom_call.1} parent=1 // pred_region
      %726 = vst [vmem:[#allocation9] sm:$0xff] %v718
      %727 = vst [vmem:[#allocation11] sm:$0xff] %v716
    $region70: #{tpu_custom_call.1} parent=1 // pred_fallthru
      _
    %s728 = scalar_lea.vmem [#allocation5], 96
    %v729 = vld [vmem:[%s728] sm:$0xff]
    %v730 = vld [vmem:[%s728 + $0x8] sm:$0xff]
    %v731 = vld [vmem:[%s728 + $0x10] sm:$0xff]
    %v732 = vld [vmem:[%s728 + $0x18] sm:$0xff]
    %733 = vmatprep.subr.mxu0 %v113
    %734 = vmatpush1.msra.mxu0 %v112
    %735 = vmatprep.subr.mxu0 %v117
    %736 = vmatpush1.msra.mxu0 %v116
    %737 = vmatprep.subr.mxu0 %v121
    %738 = vmatpush1.msra.mxu0 %v120
    %739 = vmatprep.subr.mxu0 %v125
    %740 = vmatpush1.msra.mxu0 %v124
    %741 = vmatprep.subr.mxu0 %v129
    %742 = vmatpush1.msra.mxu0 %v128
    %743 = vmatprep.subr.mxu0 %v133
    %744 = vmatpush1.msra.mxu0 %v132
    %745 = vmatprep.subr.mxu0 %v137
    %746 = vmatpush1.msra.mxu0 %v136
    %747 = vmatprep.subr.mxu0 %v141
    %748 = vmatpush1.msra.mxu0 %v140
    %749 = vmatprep.subr.mxu0 %v145
    %750 = vmatpush1.msra.mxu0 %v144
    %751 = vmatprep.subr.mxu0 %v149
    %752 = vmatpush1.msra.mxu0 %v148
    %753 = vmatprep.subr.mxu0 %v153
    %754 = vmatpush1.msra.mxu0 %v152
    %755 = vmatprep.subr.mxu0 %v157
    %756 = vmatpush1.msra.mxu0 %v156
    %757 = vmatprep.subr.mxu0 %v161
    %758 = vmatpush1.msra.mxu0 %v160
    %759 = vmatprep.subr.mxu0 %v165
    %760 = vmatpush1.msra.mxu0 %v164
    %761 = vmatprep.subr.mxu0 %v169
    %762 = vmatpush1.msra.mxu0 %v168
    %763 = vmatprep.subr.mxu0 %v173
    %764 = vmatpush1.msra.mxu0 %v172
    %765 = vmatprep.subr.mxu0 0.0
    %766 = vmatpush1.msra.mxu0 0.0
    %767 = vmatprep.subr.mxu0 0.0
    %768 = vmatpush1.msra.mxu0 0.0
    %769 = vmatprep.subr.mxu0 0.0
    %770 = vmatpush1.msra.mxu0 0.0
    %771 = vmatprep.subr.mxu0 0.0
    %772 = vmatpush1.msra.mxu0 0.0
    %773 = vmatprep.subr.mxu0 0.0
    %774 = vmatpush1.msra.mxu0 0.0
    %775 = vmatprep.subr.mxu0 0.0
    %776 = vmatpush1.msra.mxu0 0.0
    %777 = vmatprep.subr.mxu0 0.0
    %778 = vmatpush1.msra.mxu0 0.0
    %779 = vmatprep.subr.mxu0 0.0
    %780 = vmatpush1.msra.mxu0 0.0
    %781 = vmatprep.subr.mxu0 0.0
    %782 = vmatpush1.msra.mxu0 0.0
    %783 = vmatprep.subr.mxu0 0.0
    %784 = vmatpush1.msra.mxu0 0.0
    %785 = vmatprep.subr.mxu0 0.0
    %786 = vmatpush1.msra.mxu0 0.0
    %787 = vmatprep.subr.mxu0 0.0
    %788 = vmatpush1.msra.mxu0 0.0
    %789 = vmatprep.subr.mxu0 0.0
    %790 = vmatpush1.msra.mxu0 0.0
    %791 = vmatprep.subr.mxu0 0.0
    %792 = vmatpush1.msra.mxu0 0.0
    %793 = vmatprep.subr.mxu0 0.0
    %794 = vmatpush1.msra.mxu0 0.0
    %795 = vmatprep.subr.mxu0 0.0
    %796 = vmatpush1.msra.mxu0 0.0
    %797 = vmatprep.mubr.f32.mxu0 0.0
    %798 = vmatmul.mubr.f32.gmra.mrb[0].mxu0 %v718
    %v799 = vpop.f32.mrb[0].mxu0
    %v800 = vadd.f32 0.0, %v799
    %v801 = vpop.f32.mrb[0].mxu0
    %v802 = vadd.f32 0.0, %v801
    %803 = vdwg.mxu0
    %804 = vmatprep.subr.mxu0 %v115
    %805 = vmatpush1.msra.mxu0 %v114
    %806 = vmatprep.subr.mxu0 %v119
    %807 = vmatpush1.msra.mxu0 %v118
    %808 = vmatprep.subr.mxu0 %v123
    %809 = vmatpush1.msra.mxu0 %v122
    %810 = vmatprep.subr.mxu0 %v127
    %811 = vmatpush1.msra.mxu0 %v126
    %812 = vmatprep.subr.mxu0 %v131
    %813 = vmatpush1.msra.mxu0 %v130
    %814 = vmatprep.subr.mxu0 %v135
    %815 = vmatpush1.msra.mxu0 %v134
    %816 = vmatprep.subr.mxu0 %v139
    %817 = vmatpush1.msra.mxu0 %v138
    %818 = vmatprep.subr.mxu0 %v143
    %819 = vmatpush1.msra.mxu0 %v142
    %820 = vmatprep.subr.mxu0 %v147
    %821 = vmatpush1.msra.mxu0 %v146
    %822 = vmatprep.subr.mxu0 %v151
    %823 = vmatpush1.msra.mxu0 %v150
    %824 = vmatprep.subr.mxu0 %v155
    %825 = vmatpush1.msra.mxu0 %v154
    %826 = vmatprep.subr.mxu0 %v159
    %827 = vmatpush1.msra.mxu0 %v158
    %828 = vmatprep.subr.mxu0 %v163
    %829 = vmatpush1.msra.mxu0 %v162
    %830 = vmatprep.subr.mxu0 %v167
    %831 = vmatpush1.msra.mxu0 %v166
    %832 = vmatprep.subr.mxu0 %v171
    %833 = vmatpush1.msra.mxu0 %v170
    %834 = vmatprep.subr.mxu0 %v175
    %835 = vmatpush1.msra.mxu0 %v174
    %836 = vmatprep.subr.mxu0 0.0
    %837 = vmatpush1.msra.mxu0 0.0
    %838 = vmatprep.subr.mxu0 0.0
    %839 = vmatpush1.msra.mxu0 0.0
    %840 = vmatprep.subr.mxu0 0.0
    %841 = vmatpush1.msra.mxu0 0.0
    %842 = vmatprep.subr.mxu0 0.0
    %843 = vmatpush1.msra.mxu0 0.0
    %844 = vmatprep.subr.mxu0 0.0
    %845 = vmatpush1.msra.mxu0 0.0
    %846 = vmatprep.subr.mxu0 0.0
    %847 = vmatpush1.msra.mxu0 0.0
    %848 = vmatprep.subr.mxu0 0.0
    %849 = vmatpush1.msra.mxu0 0.0
    %850 = vmatprep.subr.mxu0 0.0
    %851 = vmatpush1.msra.mxu0 0.0
    %852 = vmatprep.subr.mxu0 0.0
    %853 = vmatpush1.msra.mxu0 0.0
    %854 = vmatprep.subr.mxu0 0.0
    %855 = vmatpush1.msra.mxu0 0.0
    %856 = vmatprep.subr.mxu0 0.0
    %857 = vmatpush1.msra.mxu0 0.0
    %858 = vmatprep.subr.mxu0 0.0
    %859 = vmatpush1.msra.mxu0 0.0
    %860 = vmatprep.subr.mxu0 0.0
    %861 = vmatpush1.msra.mxu0 0.0
    %862 = vmatprep.subr.mxu0 0.0
    %863 = vmatpush1.msra.mxu0 0.0
    %864 = vmatprep.subr.mxu0 0.0
    %865 = vmatpush1.msra.mxu0 0.0
    %866 = vmatprep.subr.mxu0 0.0
    %867 = vmatpush1.msra.mxu0 0.0
    %868 = vmatprep.mubr.f32.mxu0 0.0
    %869 = vmatmul.mubr.f32.gmra.mrb[0].mxu0 %v718
    %v870 = vpop.f32.mrb[0].mxu0
    %v871 = vadd.f32 0.0, %v870
    %v872 = vpop.f32.mrb[0].mxu0
    %v873 = vadd.f32 0.0, %v872
    %874 = vdwg.mxu0
    %v875 = vadd.f32 %v729, %v800
    %v876 = vadd.f32 %v730, %v802
    %v877 = vadd.f32 %v731, %v871
    %v878 = vadd.f32 %v732, %v873
    %v879 = vxor.u32 %v875, 2147483648
    %v880 = vxor.u32 %v876, 2147483648
    %v881 = vxor.u32 %v877, 2147483648
    %v882 = vmul.f32 %v879, 1.442695
    %v883 = vpow.pop %v882
    %v884 = vmul.f32 %v880, 1.442695
    %v885 = vpow.pop %v884
    %v886 = vmul.f32 %v881, 1.442695
    %v887 = vpow.pop %v886
    %v888 = vadd.f32 %v883, 1.0
    %v889 = vadd.f32 %v885, 1.0
    %v890 = vadd.f32 %v887, 1.0
    %v891 = vrcp.pop %v888
    %v892 = vmul.f32 1.0, %v891
    %v893 = vrcp.pop %v889
    %v894 = vmul.f32 1.0, %v893
    %v895 = vrcp.pop %v890
    %v896 = vmul.f32 1.0, %v895
    %v897 = vtanh.pop %v878
    %v898 = vmul.f32 %v892, %v716
    %v899 = vmul.f32 %v894, %v897
    %v900 = vadd.f32 %v898, %v899
    %v901 = vtanh.pop %v900
    %v902 = vmul.f32 %v896, %v901
    %s903 = scalar_lea.vmem [#allocation8], 24
    %904 = vst [vmem:[%s903] sm:$0xff] %v902
    %s905 = sadd.s32 %s176, 3
    %p906 = scmp.eq.s32.totalorder %s905, 7
    // Predicated region
    $region71: #{tpu_custom_call.1} parent=1 // pred_check
      %p907 = pneg %p906
    $region72: #{tpu_custom_call.1} parent=1 // pred_check_branch
      %909 = sbr.rel (%p907) target = $region74
    $region73: #{tpu_custom_call.1} parent=1 // pred_region
      %910 = vst [vmem:[#allocation9] sm:$0xff] %v902
      %911 = vst [vmem:[#allocation11] sm:$0xff] %v900
    $region74: #{tpu_custom_call.1} parent=1 // pred_fallthru
      _
    %s912 = scalar_lea.vmem [#allocation5], 128
    %v913 = vld [vmem:[%s912] sm:$0xff]
    %v914 = vld [vmem:[%s912 + $0x8] sm:$0xff]
    %v915 = vld [vmem:[%s912 + $0x10] sm:$0xff]
    %v916 = vld [vmem:[%s912 + $0x18] sm:$0xff]
    %917 = vmatprep.subr.mxu0 %v113
    %918 = vmatpush1.msra.mxu0 %v112
    %919 = vmatprep.subr.mxu0 %v117
    %920 = vmatpush1.msra.mxu0 %v116
    %921 = vmatprep.subr.mxu0 %v121
    %922 = vmatpush1.msra.mxu0 %v120
    %923 = vmatprep.subr.mxu0 %v125
    %924 = vmatpush1.msra.mxu0 %v124
    %925 = vmatprep.subr.mxu0 %v129
    %926 = vmatpush1.msra.mxu0 %v128
    %927 = vmatprep.subr.mxu0 %v133
    %928 = vmatpush1.msra.mxu0 %v132
    %929 = vmatprep.subr.mxu0 %v137
    %930 = vmatpush1.msra.mxu0 %v136
    %931 = vmatprep.subr.mxu0 %v141
    %932 = vmatpush1.msra.mxu0 %v140
    %933 = vmatprep.subr.mxu0 %v145
    %934 = vmatpush1.msra.mxu0 %v144
    %935 = vmatprep.subr.mxu0 %v149
    %936 = vmatpush1.msra.mxu0 %v148
    %937 = vmatprep.subr.mxu0 %v153
    %938 = vmatpush1.msra.mxu0 %v152
    %939 = vmatprep.subr.mxu0 %v157
    %940 = vmatpush1.msra.mxu0 %v156
    %941 = vmatprep.subr.mxu0 %v161
    %942 = vmatpush1.msra.mxu0 %v160
    %943 = vmatprep.subr.mxu0 %v165
    %944 = vmatpush1.msra.mxu0 %v164
    %945 = vmatprep.subr.mxu0 %v169
    %946 = vmatpush1.msra.mxu0 %v168
    %947 = vmatprep.subr.mxu0 %v173
    %948 = vmatpush1.msra.mxu0 %v172
    %949 = vmatprep.subr.mxu0 0.0
    %950 = vmatpush1.msra.mxu0 0.0
    %951 = vmatprep.subr.mxu0 0.0
    %952 = vmatpush1.msra.mxu0 0.0
    %953 = vmatprep.subr.mxu0 0.0
    %954 = vmatpush1.msra.mxu0 0.0
    %955 = vmatprep.subr.mxu0 0.0
    %956 = vmatpush1.msra.mxu0 0.0
    %957 = vmatprep.subr.mxu0 0.0
    %958 = vmatpush1.msra.mxu0 0.0
    %959 = vmatprep.subr.mxu0 0.0
    %960 = vmatpush1.msra.mxu0 0.0
    %961 = vmatprep.subr.mxu0 0.0
    %962 = vmatpush1.msra.mxu0 0.0
    %963 = vmatprep.subr.mxu0 0.0
    %964 = vmatpush1.msra.mxu0 0.0
    %965 = vmatprep.subr.mxu0 0.0
    %966 = vmatpush1.msra.mxu0 0.0
    %967 = vmatprep.subr.mxu0 0.0
    %968 = vmatpush1.msra.mxu0 0.0
    %969 = vmatprep.subr.mxu0 0.0
    %970 = vmatpush1.msra.mxu0 0.0
    %971 = vmatprep.subr.mxu0 0.0
    %972 = vmatpush1.msra.mxu0 0.0
    %973 = vmatprep.subr.mxu0 0.0
    %974 = vmatpush1.msra.mxu0 0.0
    %975 = vmatprep.subr.mxu0 0.0
    %976 = vmatpush1.msra.mxu0 0.0
    %977 = vmatprep.subr.mxu0 0.0
    %978 = vmatpush1.msra.mxu0 0.0
    %979 = vmatprep.subr.mxu0 0.0
    %980 = vmatpush1.msra.mxu0 0.0
    %981 = vmatprep.mubr.f32.mxu0 0.0
    %982 = vmatmul.mubr.f32.gmra.mrb[0].mxu0 %v902
    %v983 = vpop.f32.mrb[0].mxu0
    %v984 = vadd.f32 0.0, %v983
    %v985 = vpop.f32.mrb[0].mxu0
    %v986 = vadd.f32 0.0, %v985
    %987 = vdwg.mxu0
    %988 = vmatprep.subr.mxu0 %v115
    %989 = vmatpush1.msra.mxu0 %v114
    %990 = vmatprep.subr.mxu0 %v119
    %991 = vmatpush1.msra.mxu0 %v118
    %992 = vmatprep.subr.mxu0 %v123
    %993 = vmatpush1.msra.mxu0 %v122
    %994 = vmatprep.subr.mxu0 %v127
    %995 = vmatpush1.msra.mxu0 %v126
    %996 = vmatprep.subr.mxu0 %v131
    %997 = vmatpush1.msra.mxu0 %v130
    %998 = vmatprep.subr.mxu0 %v135
    %999 = vmatpush1.msra.mxu0 %v134
    %1000 = vmatprep.subr.mxu0 %v139
    %1001 = vmatpush1.msra.mxu0 %v138
    %1002 = vmatprep.subr.mxu0 %v143
    %1003 = vmatpush1.msra.mxu0 %v142
    %1004 = vmatprep.subr.mxu0 %v147
    %1005 = vmatpush1.msra.mxu0 %v146
    %1006 = vmatprep.subr.mxu0 %v151
    %1007 = vmatpush1.msra.mxu0 %v150
    %1008 = vmatprep.subr.mxu0 %v155
    %1009 = vmatpush1.msra.mxu0 %v154
    %1010 = vmatprep.subr.mxu0 %v159
    %1011 = vmatpush1.msra.mxu0 %v158
    %1012 = vmatprep.subr.mxu0 %v163
    %1013 = vmatpush1.msra.mxu0 %v162
    %1014 = vmatprep.subr.mxu0 %v167
    %1015 = vmatpush1.msra.mxu0 %v166
    %1016 = vmatprep.subr.mxu0 %v171
    %1017 = vmatpush1.msra.mxu0 %v170
    %1018 = vmatprep.subr.mxu0 %v175
    %1019 = vmatpush1.msra.mxu0 %v174
    %1020 = vmatprep.subr.mxu0 0.0
    %1021 = vmatpush1.msra.mxu0 0.0
    %1022 = vmatprep.subr.mxu0 0.0
    %1023 = vmatpush1.msra.mxu0 0.0
    %1024 = vmatprep.subr.mxu0 0.0
    %1025 = vmatpush1.msra.mxu0 0.0
    %1026 = vmatprep.subr.mxu0 0.0
    %1027 = vmatpush1.msra.mxu0 0.0
    %1028 = vmatprep.subr.mxu0 0.0
    %1029 = vmatpush1.msra.mxu0 0.0
    %1030 = vmatprep.subr.mxu0 0.0
    %1031 = vmatpush1.msra.mxu0 0.0
    %1032 = vmatprep.subr.mxu0 0.0
    %1033 = vmatpush1.msra.mxu0 0.0
    %1034 = vmatprep.subr.mxu0 0.0
    %1035 = vmatpush1.msra.mxu0 0.0
    %1036 = vmatprep.subr.mxu0 0.0
    %1037 = vmatpush1.msra.mxu0 0.0
    %1038 = vmatprep.subr.mxu0 0.0
    %1039 = vmatpush1.msra.mxu0 0.0
    %1040 = vmatprep.subr.mxu0 0.0
    %1041 = vmatpush1.msra.mxu0 0.0
    %1042 = vmatprep.subr.mxu0 0.0
    %1043 = vmatpush1.msra.mxu0 0.0
    %1044 = vmatprep.subr.mxu0 0.0
    %1045 = vmatpush1.msra.mxu0 0.0
    %1046 = vmatprep.subr.mxu0 0.0
    %1047 = vmatpush1.msra.mxu0 0.0
    %1048 = vmatprep.subr.mxu0 0.0
    %1049 = vmatpush1.msra.mxu0 0.0
    %1050 = vmatprep.subr.mxu0 0.0
    %1051 = vmatpush1.msra.mxu0 0.0
    %1052 = vmatprep.mubr.f32.mxu0 0.0
    %1053 = vmatmul.mubr.f32.gmra.mrb[0].mxu0 %v902
    %v1054 = vpop.f32.mrb[0].mxu0
    %v1055 = vadd.f32 0.0, %v1054
    %v1056 = vpop.f32.mrb[0].mxu0
    %v1057 = vadd.f32 0.0, %v1056
    %1058 = vdwg.mxu0
    %v1059 = vadd.f32 %v913, %v984
    %v1060 = vadd.f32 %v914, %v986
    %v1061 = vadd.f32 %v915, %v1055
    %v1062 = vadd.f32 %v916, %v1057
    %v1063 = vxor.u32 %v1059, 2147483648
    %v1064 = vxor.u32 %v1060, 2147483648
    %v1065 = vxor.u32 %v1061, 2147483648
    %v1066 = vmul.f32 %v1063, 1.442695
    %v1067 = vpow.pop %v1066
    %v1068 = vmul.f32 %v1064, 1.442695
    %v1069 = vpow.pop %v1068
    %v1070 = vmul.f32 %v1065, 1.442695
    %v1071 = vpow.pop %v1070
    %v1072 = vadd.f32 %v1067, 1.0
    %v1073 = vadd.f32 %v1069, 1.0
    %v1074 = vadd.f32 %v1071, 1.0
    %v1075 = vrcp.pop %v1072
    %v1076 = vmul.f32 1.0, %v1075
    %v1077 = vrcp.pop %v1073
    %v1078 = vmul.f32 1.0, %v1077
    %v1079 = vrcp.pop %v1074
    %v1080 = vmul.f32 1.0, %v1079
    %v1081 = vtanh.pop %v1062
    %v1082 = vmul.f32 %v1076, %v900
    %v1083 = vmul.f32 %v1078, %v1081
    %v1084 = vadd.f32 %v1082, %v1083
    %v1085 = vtanh.pop %v1084
    %v1086 = vmul.f32 %v1080, %v1085
    %s1087 = scalar_lea.vmem [#allocation8], 32
    %1088 = vst [vmem:[%s1087] sm:$0xff] %v1086
    %s1089 = sadd.s32 %s176, 4
    %p1090 = scmp.eq.s32.totalorder %s1089, 7
    // Predicated region
    $region75: #{tpu_custom_call.1} parent=1 // pred_check
      %p1091 = pneg %p1090
    $region76: #{tpu_custom_call.1} parent=1 // pred_check_branch
      %1093 = sbr.rel (%p1091) target = $region78
    $region77: #{tpu_custom_call.1} parent=1 // pred_region
      %1094 = vst [vmem:[#allocation9] sm:$0xff] %v1086
      %1095 = vst [vmem:[#allocation11] sm:$0xff] %v1084
    $region78: #{tpu_custom_call.1} parent=1 // pred_fallthru
      _
    %s1096 = scalar_lea.vmem [#allocation5], 160
    %v1097 = vld [vmem:[%s1096] sm:$0xff]
    %v1098 = vld [vmem:[%s1096 + $0x8] sm:$0xff]
    %v1099 = vld [vmem:[%s1096 + $0x10] sm:$0xff]
    %v1100 = vld [vmem:[%s1096 + $0x18] sm:$0xff]
    %1101 = vmatprep.subr.mxu0 %v113
    %1102 = vmatpush1.msra.mxu0 %v112
    %1103 = vmatprep.subr.mxu0 %v117
    %1104 = vmatpush1.msra.mxu0 %v116
    %1105 = vmatprep.subr.mxu0 %v121
    %1106 = vmatpush1.msra.mxu0 %v120
    %1107 = vmatprep.subr.mxu0 %v125
    %1108 = vmatpush1.msra.mxu0 %v124
    %1109 = vmatprep.subr.mxu0 %v129
    %1110 = vmatpush1.msra.mxu0 %v128
    %1111 = vmatprep.subr.mxu0 %v133
    %1112 = vmatpush1.msra.mxu0 %v132
    %1113 = vmatprep.subr.mxu0 %v137
    %1114 = vmatpush1.msra.mxu0 %v136
    %1115 = vmatprep.subr.mxu0 %v141
    %1116 = vmatpush1.msra.mxu0 %v140
    %1117 = vmatprep.subr.mxu0 %v145
    %1118 = vmatpush1.msra.mxu0 %v144
    %1119 = vmatprep.subr.mxu0 %v149
    %1120 = vmatpush1.msra.mxu0 %v148
    %1121 = vmatprep.subr.mxu0 %v153
    %1122 = vmatpush1.msra.mxu0 %v152
    %1123 = vmatprep.subr.mxu0 %v157
    %1124 = vmatpush1.msra.mxu0 %v156
    %1125 = vmatprep.subr.mxu0 %v161
    %1126 = vmatpush1.msra.mxu0 %v160
    %1127 = vmatprep.subr.mxu0 %v165
    %1128 = vmatpush1.msra.mxu0 %v164
    %1129 = vmatprep.subr.mxu0 %v169
    %1130 = vmatpush1.msra.mxu0 %v168
    %1131 = vmatprep.subr.mxu0 %v173
    %1132 = vmatpush1.msra.mxu0 %v172
    %1133 = vmatprep.subr.mxu0 0.0
    %1134 = vmatpush1.msra.mxu0 0.0
    %1135 = vmatprep.subr.mxu0 0.0
    %1136 = vmatpush1.msra.mxu0 0.0
    %1137 = vmatprep.subr.mxu0 0.0
    %1138 = vmatpush1.msra.mxu0 0.0
    %1139 = vmatprep.subr.mxu0 0.0
    %1140 = vmatpush1.msra.mxu0 0.0
    %1141 = vmatprep.subr.mxu0 0.0
    %1142 = vmatpush1.msra.mxu0 0.0
    %1143 = vmatprep.subr.mxu0 0.0
    %1144 = vmatpush1.msra.mxu0 0.0
    %1145 = vmatprep.subr.mxu0 0.0
    %1146 = vmatpush1.msra.mxu0 0.0
    %1147 = vmatprep.subr.mxu0 0.0
    %1148 = vmatpush1.msra.mxu0 0.0
    %1149 = vmatprep.subr.mxu0 0.0
    %1150 = vmatpush1.msra.mxu0 0.0
    %1151 = vmatprep.subr.mxu0 0.0
    %1152 = vmatpush1.msra.mxu0 0.0
    %1153 = vmatprep.subr.mxu0 0.0
    %1154 = vmatpush1.msra.mxu0 0.0
    %1155 = vmatprep.subr.mxu0 0.0
    %1156 = vmatpush1.msra.mxu0 0.0
    %1157 = vmatprep.subr.mxu0 0.0
    %1158 = vmatpush1.msra.mxu0 0.0
    %1159 = vmatprep.subr.mxu0 0.0
    %1160 = vmatpush1.msra.mxu0 0.0
    %1161 = vmatprep.subr.mxu0 0.0
    %1162 = vmatpush1.msra.mxu0 0.0
    %1163 = vmatprep.subr.mxu0 0.0
    %1164 = vmatpush1.msra.mxu0 0.0
    %1165 = vmatprep.mubr.f32.mxu0 0.0
    %1166 = vmatmul.mubr.f32.gmra.mrb[0].mxu0 %v1086
    %v1167 = vpop.f32.mrb[0].mxu0
    %v1168 = vadd.f32 0.0, %v1167
    %v1169 = vpop.f32.mrb[0].mxu0
    %v1170 = vadd.f32 0.0, %v1169
    %1171 = vdwg.mxu0
    %1172 = vmatprep.subr.mxu0 %v115
    %1173 = vmatpush1.msra.mxu0 %v114
    %1174 = vmatprep.subr.mxu0 %v119
    %1175 = vmatpush1.msra.mxu0 %v118
    %1176 = vmatprep.subr.mxu0 %v123
    %1177 = vmatpush1.msra.mxu0 %v122
    %1178 = vmatprep.subr.mxu0 %v127
    %1179 = vmatpush1.msra.mxu0 %v126
    %1180 = vmatprep.subr.mxu0 %v131
    %1181 = vmatpush1.msra.mxu0 %v130
    %1182 = vmatprep.subr.mxu0 %v135
    %1183 = vmatpush1.msra.mxu0 %v134
    %1184 = vmatprep.subr.mxu0 %v139
    %1185 = vmatpush1.msra.mxu0 %v138
    %1186 = vmatprep.subr.mxu0 %v143
    %1187 = vmatpush1.msra.mxu0 %v142
    %1188 = vmatprep.subr.mxu0 %v147
    %1189 = vmatpush1.msra.mxu0 %v146
    %1190 = vmatprep.subr.mxu0 %v151
    %1191 = vmatpush1.msra.mxu0 %v150
    %1192 = vmatprep.subr.mxu0 %v155
    %1193 = vmatpush1.msra.mxu0 %v154
    %1194 = vmatprep.subr.mxu0 %v159
    %1195 = vmatpush1.msra.mxu0 %v158
    %1196 = vmatprep.subr.mxu0 %v163
    %1197 = vmatpush1.msra.mxu0 %v162
    %1198 = vmatprep.subr.mxu0 %v167
    %1199 = vmatpush1.msra.mxu0 %v166
    %1200 = vmatprep.subr.mxu0 %v171
    %1201 = vmatpush1.msra.mxu0 %v170
    %1202 = vmatprep.subr.mxu0 %v175
    %1203 = vmatpush1.msra.mxu0 %v174
    %1204 = vmatprep.subr.mxu0 0.0
    %1205 = vmatpush1.msra.mxu0 0.0
    %1206 = vmatprep.subr.mxu0 0.0
    %1207 = vmatpush1.msra.mxu0 0.0
    %1208 = vmatprep.subr.mxu0 0.0
    %1209 = vmatpush1.msra.mxu0 0.0
    %1210 = vmatprep.subr.mxu0 0.0
    %1211 = vmatpush1.msra.mxu0 0.0
    %1212 = vmatprep.subr.mxu0 0.0
    %1213 = vmatpush1.msra.mxu0 0.0
    %1214 = vmatprep.subr.mxu0 0.0
    %1215 = vmatpush1.msra.mxu0 0.0
    %1216 = vmatprep.subr.mxu0 0.0
    %1217 = vmatpush1.msra.mxu0 0.0
    %1218 = vmatprep.subr.mxu0 0.0
    %1219 = vmatpush1.msra.mxu0 0.0
    %1220 = vmatprep.subr.mxu0 0.0
    %1221 = vmatpush1.msra.mxu0 0.0
    %1222 = vmatprep.subr.mxu0 0.0
    %1223 = vmatpush1.msra.mxu0 0.0
    %1224 = vmatprep.subr.mxu0 0.0
    %1225 = vmatpush1.msra.mxu0 0.0
    %1226 = vmatprep.subr.mxu0 0.0
    %1227 = vmatpush1.msra.mxu0 0.0
    %1228 = vmatprep.subr.mxu0 0.0
    %1229 = vmatpush1.msra.mxu0 0.0
    %1230 = vmatprep.subr.mxu0 0.0
    %1231 = vmatpush1.msra.mxu0 0.0
    %1232 = vmatprep.subr.mxu0 0.0
    %1233 = vmatpush1.msra.mxu0 0.0
    %1234 = vmatprep.subr.mxu0 0.0
    %1235 = vmatpush1.msra.mxu0 0.0
    %1236 = vmatprep.mubr.f32.mxu0 0.0
    %1237 = vmatmul.mubr.f32.gmra.mrb[0].mxu0 %v1086
    %v1238 = vpop.f32.mrb[0].mxu0
    %v1239 = vadd.f32 0.0, %v1238
    %v1240 = vpop.f32.mrb[0].mxu0
    %v1241 = vadd.f32 0.0, %v1240
    %1242 = vdwg.mxu0
    %v1243 = vadd.f32 %v1097, %v1168
    %v1244 = vadd.f32 %v1098, %v1170
    %v1245 = vadd.f32 %v1099, %v1239
    %v1246 = vadd.f32 %v1100, %v1241
    %v1247 = vxor.u32 %v1243, 2147483648
    %v1248 = vxor.u32 %v1244, 2147483648
    %v1249 = vxor.u32 %v1245, 2147483648
    %v1250 = vmul.f32 %v1247, 1.442695
    %v1251 = vpow.pop %v1250
    %v1252 = vmul.f32 %v1248, 1.442695
    %v1253 = vpow.pop %v1252
    %v1254 = vmul.f32 %v1249, 1.442695
    %v1255 = vpow.pop %v1254
    %v1256 = vadd.f32 %v1251, 1.0
    %v1257 = vadd.f32 %v1253, 1.0
    %v1258 = vadd.f32 %v1255, 1.0
    %v1259 = vrcp.pop %v1256
    %v1260 = vmul.f32 1.0, %v1259
    %v1261 = vrcp.pop %v1257
    %v1262 = vmul.f32 1.0, %v1261
    %v1263 = vrcp.pop %v1258
    %v1264 = vmul.f32 1.0, %v1263
    %v1265 = vtanh.pop %v1246
    %v1266 = vmul.f32 %v1260, %v1084
    %v1267 = vmul.f32 %v1262, %v1265
    %v1268 = vadd.f32 %v1266, %v1267
    %v1269 = vtanh.pop %v1268
    %v1270 = vmul.f32 %v1264, %v1269
    %s1271 = scalar_lea.vmem [#allocation8], 40
    %1272 = vst [vmem:[%s1271] sm:$0xff] %v1270
    %s1273 = sadd.s32 %s176, 5
    %p1274 = scmp.eq.s32.totalorder %s1273, 7
    // Predicated region
    $region79: #{tpu_custom_call.1} parent=1 // pred_check
      %p1275 = pneg %p1274
    $region80: #{tpu_custom_call.1} parent=1 // pred_check_branch
      %1277 = sbr.rel (%p1275) target = $region82
    $region81: #{tpu_custom_call.1} parent=1 // pred_region
      %1278 = vst [vmem:[#allocation9] sm:$0xff] %v1270
      %1279 = vst [vmem:[#allocation11] sm:$0xff] %v1268
    $region82: #{tpu_custom_call.1} parent=1 // pred_fallthru
      _
    %s1280 = scalar_lea.vmem [#allocation5], 192
    %v1281 = vld [vmem:[%s1280] sm:$0xff]
    %v1282 = vld [vmem:[%s1280 + $0x8] sm:$0xff]
    %v1283 = vld [vmem:[%s1280 + $0x10] sm:$0xff]
    %v1284 = vld [vmem:[%s1280 + $0x18] sm:$0xff]
    %1285 = vmatprep.subr.mxu0 %v113
    %1286 = vmatpush1.msra.mxu0 %v112
    %1287 = vmatprep.subr.mxu0 %v117
    %1288 = vmatpush1.msra.mxu0 %v116
    %1289 = vmatprep.subr.mxu0 %v121
    %1290 = vmatpush1.msra.mxu0 %v120
    %1291 = vmatprep.subr.mxu0 %v125
    %1292 = vmatpush1.msra.mxu0 %v124
    %1293 = vmatprep.subr.mxu0 %v129
    %1294 = vmatpush1.msra.mxu0 %v128
    %1295 = vmatprep.subr.mxu0 %v133
    %1296 = vmatpush1.msra.mxu0 %v132
    %1297 = vmatprep.subr.mxu0 %v137
    %1298 = vmatpush1.msra.mxu0 %v136
    %1299 = vmatprep.subr.mxu0 %v141
    %1300 = vmatpush1.msra.mxu0 %v140
    %1301 = vmatprep.subr.mxu0 %v145
    %1302 = vmatpush1.msra.mxu0 %v144
    %1303 = vmatprep.subr.mxu0 %v149
    %1304 = vmatpush1.msra.mxu0 %v148
    %1305 = vmatprep.subr.mxu0 %v153
    %1306 = vmatpush1.msra.mxu0 %v152
    %1307 = vmatprep.subr.mxu0 %v157
    %1308 = vmatpush1.msra.mxu0 %v156
    %1309 = vmatprep.subr.mxu0 %v161
    %1310 = vmatpush1.msra.mxu0 %v160
    %1311 = vmatprep.subr.mxu0 %v165
    %1312 = vmatpush1.msra.mxu0 %v164
    %1313 = vmatprep.subr.mxu0 %v169
    %1314 = vmatpush1.msra.mxu0 %v168
    %1315 = vmatprep.subr.mxu0 %v173
    %1316 = vmatpush1.msra.mxu0 %v172
    %1317 = vmatprep.subr.mxu0 0.0
    %1318 = vmatpush1.msra.mxu0 0.0
    %1319 = vmatprep.subr.mxu0 0.0
    %1320 = vmatpush1.msra.mxu0 0.0
    %1321 = vmatprep.subr.mxu0 0.0
    %1322 = vmatpush1.msra.mxu0 0.0
    %1323 = vmatprep.subr.mxu0 0.0
    %1324 = vmatpush1.msra.mxu0 0.0
    %1325 = vmatprep.subr.mxu0 0.0
    %1326 = vmatpush1.msra.mxu0 0.0
    %1327 = vmatprep.subr.mxu0 0.0
    %1328 = vmatpush1.msra.mxu0 0.0
    %1329 = vmatprep.subr.mxu0 0.0
    %1330 = vmatpush1.msra.mxu0 0.0
    %1331 = vmatprep.subr.mxu0 0.0
    %1332 = vmatpush1.msra.mxu0 0.0
    %1333 = vmatprep.subr.mxu0 0.0
    %1334 = vmatpush1.msra.mxu0 0.0
    %1335 = vmatprep.subr.mxu0 0.0
    %1336 = vmatpush1.msra.mxu0 0.0
    %1337 = vmatprep.subr.mxu0 0.0
    %1338 = vmatpush1.msra.mxu0 0.0
    %1339 = vmatprep.subr.mxu0 0.0
    %1340 = vmatpush1.msra.mxu0 0.0
    %1341 = vmatprep.subr.mxu0 0.0
    %1342 = vmatpush1.msra.mxu0 0.0
    %1343 = vmatprep.subr.mxu0 0.0
    %1344 = vmatpush1.msra.mxu0 0.0
    %1345 = vmatprep.subr.mxu0 0.0
    %1346 = vmatpush1.msra.mxu0 0.0
    %1347 = vmatprep.subr.mxu0 0.0
    %1348 = vmatpush1.msra.mxu0 0.0
    %1349 = vmatprep.mubr.f32.mxu0 0.0
    %1350 = vmatmul.mubr.f32.gmra.mrb[0].mxu0 %v1270
    %v1351 = vpop.f32.mrb[0].mxu0
    %v1352 = vadd.f32 0.0, %v1351
    %v1353 = vpop.f32.mrb[0].mxu0
    %v1354 = vadd.f32 0.0, %v1353
    %1355 = vdwg.mxu0
    %1356 = vmatprep.subr.mxu0 %v115
    %1357 = vmatpush1.msra.mxu0 %v114
    %1358 = vmatprep.subr.mxu0 %v119
    %1359 = vmatpush1.msra.mxu0 %v118
    %1360 = vmatprep.subr.mxu0 %v123
    %1361 = vmatpush1.msra.mxu0 %v122
    %1362 = vmatprep.subr.mxu0 %v127
    %1363 = vmatpush1.msra.mxu0 %v126
    %1364 = vmatprep.subr.mxu0 %v131
    %1365 = vmatpush1.msra.mxu0 %v130
    %1366 = vmatprep.subr.mxu0 %v135
    %1367 = vmatpush1.msra.mxu0 %v134
    %1368 = vmatprep.subr.mxu0 %v139
    %1369 = vmatpush1.msra.mxu0 %v138
    %1370 = vmatprep.subr.mxu0 %v143
    %1371 = vmatpush1.msra.mxu0 %v142
    %1372 = vmatprep.subr.mxu0 %v147
    %1373 = vmatpush1.msra.mxu0 %v146
    %1374 = vmatprep.subr.mxu0 %v151
    %1375 = vmatpush1.msra.mxu0 %v150
    %1376 = vmatprep.subr.mxu0 %v155
    %1377 = vmatpush1.msra.mxu0 %v154
    %1378 = vmatprep.subr.mxu0 %v159
    %1379 = vmatpush1.msra.mxu0 %v158
    %1380 = vmatprep.subr.mxu0 %v163
    %1381 = vmatpush1.msra.mxu0 %v162
    %1382 = vmatprep.subr.mxu0 %v167
    %1383 = vmatpush1.msra.mxu0 %v166
    %1384 = vmatprep.subr.mxu0 %v171
    %1385 = vmatpush1.msra.mxu0 %v170
    %1386 = vmatprep.subr.mxu0 %v175
    %1387 = vmatpush1.msra.mxu0 %v174
    %1388 = vmatprep.subr.mxu0 0.0
    %1389 = vmatpush1.msra.mxu0 0.0
    %1390 = vmatprep.subr.mxu0 0.0
    %1391 = vmatpush1.msra.mxu0 0.0
    %1392 = vmatprep.subr.mxu0 0.0
    %1393 = vmatpush1.msra.mxu0 0.0
    %1394 = vmatprep.subr.mxu0 0.0
    %1395 = vmatpush1.msra.mxu0 0.0
    %1396 = vmatprep.subr.mxu0 0.0
    %1397 = vmatpush1.msra.mxu0 0.0
    %1398 = vmatprep.subr.mxu0 0.0
    %1399 = vmatpush1.msra.mxu0 0.0
    %1400 = vmatprep.subr.mxu0 0.0
    %1401 = vmatpush1.msra.mxu0 0.0
    %1402 = vmatprep.subr.mxu0 0.0
    %1403 = vmatpush1.msra.mxu0 0.0
    %1404 = vmatprep.subr.mxu0 0.0
    %1405 = vmatpush1.msra.mxu0 0.0
    %1406 = vmatprep.subr.mxu0 0.0
    %1407 = vmatpush1.msra.mxu0 0.0
    %1408 = vmatprep.subr.mxu0 0.0
    %1409 = vmatpush1.msra.mxu0 0.0
    %1410 = vmatprep.subr.mxu0 0.0
    %1411 = vmatpush1.msra.mxu0 0.0
    %1412 = vmatprep.subr.mxu0 0.0
    %1413 = vmatpush1.msra.mxu0 0.0
    %1414 = vmatprep.subr.mxu0 0.0
    %1415 = vmatpush1.msra.mxu0 0.0
    %1416 = vmatprep.subr.mxu0 0.0
    %1417 = vmatpush1.msra.mxu0 0.0
    %1418 = vmatprep.subr.mxu0 0.0
    %1419 = vmatpush1.msra.mxu0 0.0
    %1420 = vmatprep.mubr.f32.mxu0 0.0
    %1421 = vmatmul.mubr.f32.gmra.mrb[0].mxu0 %v1270
    %v1422 = vpop.f32.mrb[0].mxu0
    %v1423 = vadd.f32 0.0, %v1422
    %v1424 = vpop.f32.mrb[0].mxu0
    %v1425 = vadd.f32 0.0, %v1424
    %1426 = vdwg.mxu0
    %v1427 = vadd.f32 %v1281, %v1352
    %v1428 = vadd.f32 %v1282, %v1354
    %v1429 = vadd.f32 %v1283, %v1423
    %v1430 = vadd.f32 %v1284, %v1425
    %v1431 = vxor.u32 %v1427, 2147483648
    %v1432 = vxor.u32 %v1428, 2147483648
    %v1433 = vxor.u32 %v1429, 2147483648
    %v1434 = vmul.f32 %v1431, 1.442695
    %v1435 = vpow.pop %v1434
    %v1436 = vmul.f32 %v1432, 1.442695
    %v1437 = vpow.pop %v1436
    %v1438 = vmul.f32 %v1433, 1.442695
    %v1439 = vpow.pop %v1438
    %v1440 = vadd.f32 %v1435, 1.0
    %v1441 = vadd.f32 %v1437, 1.0
    %v1442 = vadd.f32 %v1439, 1.0
    %v1443 = vrcp.pop %v1440
    %v1444 = vmul.f32 1.0, %v1443
    %v1445 = vrcp.pop %v1441
    %v1446 = vmul.f32 1.0, %v1445
    %v1447 = vrcp.pop %v1442
    %v1448 = vmul.f32 1.0, %v1447
    %v1449 = vtanh.pop %v1430
    %v1450 = vmul.f32 %v1444, %v1268
    %v1451 = vmul.f32 %v1446, %v1449
    %v1452 = vadd.f32 %v1450, %v1451
    %v1453 = vtanh.pop %v1452
    %v1454 = vmul.f32 %v1448, %v1453
    %s1455 = scalar_lea.vmem [#allocation8], 48
    %1456 = vst [vmem:[%s1455] sm:$0xff] %v1454
    %s1457 = sadd.s32 %s176, 6
    %p1458 = scmp.eq.s32.totalorder %s1457, 7
    // Predicated region
    $region83: #{tpu_custom_call.1} parent=1 // pred_check
      %p1459 = pneg %p1458
    $region84: #{tpu_custom_call.1} parent=1 // pred_check_branch
      %1461 = sbr.rel (%p1459) target = $region86
    $region85: #{tpu_custom_call.1} parent=1 // pred_region
      %1462 = vst [vmem:[#allocation9] sm:$0xff] %v1454
      %1463 = vst [vmem:[#allocation11] sm:$0xff] %v1452
    $region86: #{tpu_custom_call.1} parent=1 // pred_fallthru
      _
    %s1464 = scalar_lea.vmem [#allocation5], 224
    %v1465 = vld [vmem:[%s1464] sm:$0xff]
    %v1466 = vld [vmem:[%s1464 + $0x8] sm:$0xff]
    %v1467 = vld [vmem:[%s1464 + $0x10] sm:$0xff]
    %v1468 = vld [vmem:[%s1464 + $0x18] sm:$0xff]
    %1469 = vmatprep.subr.mxu0 %v113
    %1470 = vmatpush1.msra.mxu0 %v112
    %1471 = vmatprep.subr.mxu0 %v117
    %1472 = vmatpush1.msra.mxu0 %v116
    %1473 = vmatprep.subr.mxu0 %v121
    %1474 = vmatpush1.msra.mxu0 %v120
    %1475 = vmatprep.subr.mxu0 %v125
    %1476 = vmatpush1.msra.mxu0 %v124
    %1477 = vmatprep.subr.mxu0 %v129
    %1478 = vmatpush1.msra.mxu0 %v128
    %1479 = vmatprep.subr.mxu0 %v133
    %1480 = vmatpush1.msra.mxu0 %v132
    %1481 = vmatprep.subr.mxu0 %v137
    %1482 = vmatpush1.msra.mxu0 %v136
    %1483 = vmatprep.subr.mxu0 %v141
    %1484 = vmatpush1.msra.mxu0 %v140
    %1485 = vmatprep.subr.mxu0 %v145
    %1486 = vmatpush1.msra.mxu0 %v144
    %1487 = vmatprep.subr.mxu0 %v149
    %1488 = vmatpush1.msra.mxu0 %v148
    %1489 = vmatprep.subr.mxu0 %v153
    %1490 = vmatpush1.msra.mxu0 %v152
    %1491 = vmatprep.subr.mxu0 %v157
    %1492 = vmatpush1.msra.mxu0 %v156
    %1493 = vmatprep.subr.mxu0 %v161
    %1494 = vmatpush1.msra.mxu0 %v160
    %1495 = vmatprep.subr.mxu0 %v165
    %1496 = vmatpush1.msra.mxu0 %v164
    %1497 = vmatprep.subr.mxu0 %v169
    %1498 = vmatpush1.msra.mxu0 %v168
    %1499 = vmatprep.subr.mxu0 %v173
    %1500 = vmatpush1.msra.mxu0 %v172
    %1501 = vmatprep.subr.mxu0 0.0
    %1502 = vmatpush1.msra.mxu0 0.0
    %1503 = vmatprep.subr.mxu0 0.0
    %1504 = vmatpush1.msra.mxu0 0.0
    %1505 = vmatprep.subr.mxu0 0.0
    %1506 = vmatpush1.msra.mxu0 0.0
    %1507 = vmatprep.subr.mxu0 0.0
    %1508 = vmatpush1.msra.mxu0 0.0
    %1509 = vmatprep.subr.mxu0 0.0
    %1510 = vmatpush1.msra.mxu0 0.0
    %1511 = vmatprep.subr.mxu0 0.0
    %1512 = vmatpush1.msra.mxu0 0.0
    %1513 = vmatprep.subr.mxu0 0.0
    %1514 = vmatpush1.msra.mxu0 0.0
    %1515 = vmatprep.subr.mxu0 0.0
    %1516 = vmatpush1.msra.mxu0 0.0
    %1517 = vmatprep.subr.mxu0 0.0
    %1518 = vmatpush1.msra.mxu0 0.0
    %1519 = vmatprep.subr.mxu0 0.0
    %1520 = vmatpush1.msra.mxu0 0.0
    %1521 = vmatprep.subr.mxu0 0.0
    %1522 = vmatpush1.msra.mxu0 0.0
    %1523 = vmatprep.subr.mxu0 0.0
    %1524 = vmatpush1.msra.mxu0 0.0
    %1525 = vmatprep.subr.mxu0 0.0
    %1526 = vmatpush1.msra.mxu0 0.0
    %1527 = vmatprep.subr.mxu0 0.0
    %1528 = vmatpush1.msra.mxu0 0.0
    %1529 = vmatprep.subr.mxu0 0.0
    %1530 = vmatpush1.msra.mxu0 0.0
    %1531 = vmatprep.subr.mxu0 0.0
    %1532 = vmatpush1.msra.mxu0 0.0
    %1533 = vmatprep.mubr.f32.mxu0 0.0
    %1534 = vmatmul.mubr.f32.gmra.mrb[0].mxu0 %v1454
    %v1535 = vpop.f32.mrb[0].mxu0
    %v1536 = vadd.f32 0.0, %v1535
    %v1537 = vpop.f32.mrb[0].mxu0
    %v1538 = vadd.f32 0.0, %v1537
    %1539 = vdwg.mxu0
    %1540 = vmatprep.subr.mxu0 %v115
    %1541 = vmatpush1.msra.mxu0 %v114
    %1542 = vmatprep.subr.mxu0 %v119
    %1543 = vmatpush1.msra.mxu0 %v118
    %1544 = vmatprep.subr.mxu0 %v123
    %1545 = vmatpush1.msra.mxu0 %v122
    %1546 = vmatprep.subr.mxu0 %v127
    %1547 = vmatpush1.msra.mxu0 %v126
    %1548 = vmatprep.subr.mxu0 %v131
    %1549 = vmatpush1.msra.mxu0 %v130
    %1550 = vmatprep.subr.mxu0 %v135
    %1551 = vmatpush1.msra.mxu0 %v134
    %1552 = vmatprep.subr.mxu0 %v139
    %1553 = vmatpush1.msra.mxu0 %v138
    %1554 = vmatprep.subr.mxu0 %v143
    %1555 = vmatpush1.msra.mxu0 %v142
    %1556 = vmatprep.subr.mxu0 %v147
    %1557 = vmatpush1.msra.mxu0 %v146
    %1558 = vmatprep.subr.mxu0 %v151
    %1559 = vmatpush1.msra.mxu0 %v150
    %1560 = vmatprep.subr.mxu0 %v155
    %1561 = vmatpush1.msra.mxu0 %v154
    %1562 = vmatprep.subr.mxu0 %v159
    %1563 = vmatpush1.msra.mxu0 %v158
    %1564 = vmatprep.subr.mxu0 %v163
    %1565 = vmatpush1.msra.mxu0 %v162
    %1566 = vmatprep.subr.mxu0 %v167
    %1567 = vmatpush1.msra.mxu0 %v166
    %1568 = vmatprep.subr.mxu0 %v171
    %1569 = vmatpush1.msra.mxu0 %v170
    %1570 = vmatprep.subr.mxu0 %v175
    %1571 = vmatpush1.msra.mxu0 %v174
    %1572 = vmatprep.subr.mxu0 0.0
    %1573 = vmatpush1.msra.mxu0 0.0
    %1574 = vmatprep.subr.mxu0 0.0
    %1575 = vmatpush1.msra.mxu0 0.0
    %1576 = vmatprep.subr.mxu0 0.0
    %1577 = vmatpush1.msra.mxu0 0.0
    %1578 = vmatprep.subr.mxu0 0.0
    %1579 = vmatpush1.msra.mxu0 0.0
    %1580 = vmatprep.subr.mxu0 0.0
    %1581 = vmatpush1.msra.mxu0 0.0
    %1582 = vmatprep.subr.mxu0 0.0
    %1583 = vmatpush1.msra.mxu0 0.0
    %1584 = vmatprep.subr.mxu0 0.0
    %1585 = vmatpush1.msra.mxu0 0.0
    %1586 = vmatprep.subr.mxu0 0.0
    %1587 = vmatpush1.msra.mxu0 0.0
    %1588 = vmatprep.subr.mxu0 0.0
    %1589 = vmatpush1.msra.mxu0 0.0
    %1590 = vmatprep.subr.mxu0 0.0
    %1591 = vmatpush1.msra.mxu0 0.0
    %1592 = vmatprep.subr.mxu0 0.0
    %1593 = vmatpush1.msra.mxu0 0.0
    %1594 = vmatprep.subr.mxu0 0.0
    %1595 = vmatpush1.msra.mxu0 0.0
    %1596 = vmatprep.subr.mxu0 0.0
    %1597 = vmatpush1.msra.mxu0 0.0
    %1598 = vmatprep.subr.mxu0 0.0
    %1599 = vmatpush1.msra.mxu0 0.0
    %1600 = vmatprep.subr.mxu0 0.0
    %1601 = vmatpush1.msra.mxu0 0.0
    %1602 = vmatprep.subr.mxu0 0.0
    %1603 = vmatpush1.msra.mxu0 0.0
    %1604 = vmatprep.mubr.f32.mxu0 0.0
    %1605 = vmatmul.mubr.f32.gmra.mrb[0].mxu0 %v1454
    %v1606 = vpop.f32.mrb[0].mxu0
    %v1607 = vadd.f32 0.0, %v1606
    %v1608 = vpop.f32.mrb[0].mxu0
    %v1609 = vadd.f32 0.0, %v1608
    %1610 = vdwg.mxu0
    %v1611 = vadd.f32 %v1465, %v1536
    %v1612 = vadd.f32 %v1466, %v1538
    %v1613 = vadd.f32 %v1467, %v1607
    %v1614 = vadd.f32 %v1468, %v1609
    %v1615 = vxor.u32 %v1611, 2147483648
    %v1616 = vxor.u32 %v1612, 2147483648
    %v1617 = vxor.u32 %v1613, 2147483648
    %v1618 = vmul.f32 %v1615, 1.442695
    %v1619 = vpow.pop %v1618
    %v1620 = vmul.f32 %v1616, 1.442695
    %v1621 = vpow.pop %v1620
    %v1622 = vmul.f32 %v1617, 1.442695
    %v1623 = vpow.pop %v1622
    %v1624 = vadd.f32 %v1619, 1.0
    %v1625 = vadd.f32 %v1621, 1.0
    %v1626 = vadd.f32 %v1623, 1.0
    %v1627 = vrcp.pop %v1624
    %v1628 = vmul.f32 1.0, %v1627
    %v1629 = vrcp.pop %v1625
    %v1630 = vmul.f32 1.0, %v1629
    %v1631 = vrcp.pop %v1626
    %v1632 = vmul.f32 1.0, %v1631
    %v1633 = vtanh.pop %v1614
    %v1634 = vmul.f32 %v1628, %v1452
    %v1635 = vmul.f32 %v1630, %v1633
    %v1636 = vadd.f32 %v1634, %v1635
    %v1637 = vtanh.pop %v1636
    %v1638 = vmul.f32 %v1632, %v1637
    %s1639 = scalar_lea.vmem [#allocation8], 56
    %1640 = vst [vmem:[%s1639] sm:$0xff] %v1638
    %s1641 = sadd.s32 %s176, 7
    %p1642 = scmp.eq.s32.totalorder %s1641, 7
    // Predicated region
    $region87: #{tpu_custom_call.1} parent=1 // pred_check
      %p1643 = pneg %p1642
    $region88: #{tpu_custom_call.1} parent=1 // pred_check_branch
      %1645 = sbr.rel (%p1643) target = $region90
    $region89: #{tpu_custom_call.1} parent=1 // pred_region
      %1646 = vst [vmem:[#allocation9] sm:$0xff] %v1638
      %1647 = vst [vmem:[#allocation11] sm:$0xff] %v1636
    $region90: #{tpu_custom_call.1} parent=1 // pred_fallthru
      _
    %1648 = vst [vmem:[#allocation3] sm:$0xff] %v1638
    %1649 = vst [vmem:[#allocation4] sm:$0xff] %v1636
    // Predicated region
    $region91: #{tpu_custom_call.1} parent=1 // pred_check
      _
    $region92: #{tpu_custom_call.1} parent=1 // pred_check_branch
      %1651 = sbr.rel (0) target = $region94
    $region93: #{tpu_custom_call.1} parent=1 // pred_region
      %s1653 = ssub.s32 1024, 1024
      %1654 = vsyncadd [#allocation7], %s1653
      %s1655 = sshll.u32 [#allocation8], 4
      %s1656 = int_to_ptr.vmem [resolvable:$true] %s1655
      %1661 = dma.vmem_to_hbm [thread:$0]  %s1656, 1024, %s4, [#allocation7], 128, 128, 8
    $region94: #{tpu_custom_call.1} parent=1 // pred_fallthru
      _
    // Predicated region
    $region95: #{tpu_custom_call.1} parent=1 // pred_check
      _
    $region96: #{tpu_custom_call.1} parent=1 // pred_check_branch
      %1663 = sbr.rel (0) target = $region98
    $region97: #{tpu_custom_call.1} parent=1 // pred_region
      %s1665 = ssub.s32 128, 128
      %1666 = vsyncadd [#allocation10], %s1665
      %s1668 = sshll.u32 [#allocation9], 4
      %s1669 = int_to_ptr.vmem [resolvable:$true] %s1668
      %1671 = dma.vmem_to_hbm [thread:$0]  %s1669, 128, %s5, [#allocation10]
    $region98: #{tpu_custom_call.1} parent=1 // pred_fallthru
      _
    // Predicated region
    $region99: #{tpu_custom_call.1} parent=1 // pred_check
      _
    $region100: #{tpu_custom_call.1} parent=1 // pred_check_branch
      %1673 = sbr.rel (0) target = $region102
    $region101: #{tpu_custom_call.1} parent=1 // pred_region
      %s1675 = ssub.s32 128, 128
      %1676 = vsyncadd [#allocation10], %s1675
      %s1678 = sshll.u32 [#allocation11], 4
      %s1679 = int_to_ptr.vmem [resolvable:$true] %s1678
      %1681 = dma.vmem_to_hbm [thread:$0]  %s1679, 128, %s6, [#allocation10]
    $region102: #{tpu_custom_call.1} parent=1 // pred_fallthru
      _
    // Predicated region
    $region103: #{tpu_custom_call.1} parent=1 // pred_check
      _
    $region104: #{tpu_custom_call.1} parent=1 // pred_check_branch
      %1683 = sbr.rel (0) target = $region106
    $region105: #{tpu_custom_call.1} parent=1 // pred_region
      %1684 = dma.done [#allocation7], 1024
    $region106: #{tpu_custom_call.1} parent=1 // pred_fallthru
      _
    // Predicated region
    $region107: #{tpu_custom_call.1} parent=1 // pred_check
      _
    $region108: #{tpu_custom_call.1} parent=1 // pred_check_branch
      %1686 = sbr.rel (0) target = $region110
    $region109: #{tpu_custom_call.1} parent=1 // pred_region
      %1687 = dma.done [#allocation10], 128
    $region110: #{tpu_custom_call.1} parent=1 // pred_fallthru
      _
    // Predicated region
    $region111: #{tpu_custom_call.1} parent=1 // pred_check
      _
    $region112: #{tpu_custom_call.1} parent=1 // pred_check_branch
      %1689 = sbr.rel (0) target = $region114
    $region113: #{tpu_custom_call.1} parent=1 // pred_region
      %1690 = dma.done [#allocation10], 128
    $region114: #{tpu_custom_call.1} parent=1 // pred_fallthru
      _
    %1691 = vsyncpa [#allocation6], 1
    %1692 = vsyncpa [#allocation7], 1
    %1693 = vsyncpa [#allocation10], 1

</llo_original>
